<compile_context>
chip_gen: v5e
topology: v5e:2x2
jax: 0.10.0
libtpu: 0.0.40
codegen_flags: <defaults>
</compile_context>

<pallas_src>
import functools

import jax
import jax.numpy as jnp
from jax import lax
from jax.experimental import pallas as pl
from jax.experimental.pallas import tpu as pltpu

_LN_EPS = 1e-5


def _patch_expand_kernel(x_ref, w_ref, gamma_ref, beta_ref, o_ref, *, mxu_dtype):
    # x_ref:     (R*W, C)      input token tile in its native dtype
    # w_ref:     (C, 2C)       expand weight, already transposed (y = x @ W.T), mxu_dtype
    # gamma_ref: (1, C)        LayerNorm gamma, tiled x2 along channels (C = 2*Cq), f32
    # beta_ref:  (1, C)        LayerNorm beta,  tiled x2 along channels, f32
    # o_ref:     (R, 2, W, C)  pixel-shuffled output block, order (r, p1, w, (p2 c))
    R, _, W, two_cq = o_ref.shape
    Cq = two_cq // 2

    # Cast the activation tile to the MXU operand dtype in-registers (no wrapper-side
    # HBM pass), then the main expand matmul on the MXU with f32 accumulation.
    xv = x_ref[...]
    if xv.dtype != mxu_dtype:
        xv = xv.astype(mxu_dtype)
    y = jnp.dot(xv, w_ref[...], preferred_element_type=jnp.float32)   # (R*W, 4*Cq)
    # Split the token rows; lane (last) dim untouched -> cheap sublane-only reshape.
    y = y.reshape(R, W, 4 * Cq)

    gamma = gamma_ref[...]  # (1, 2*Cq) -> broadcasts over (R, W, 2*Cq)
    beta = beta_ref[...]

    # Per-group LayerNorm on VPU/XLU/EUP (no MXU), short live ranges per (R, W, Cq) slice.
    for p1 in range(2):
        halves = []
        for p2 in range(2):
            g = 2 * p1 + p2
            yg = y[:, :, g * Cq:(g + 1) * Cq]              # (R, W, Cq) static lane slice
            mu = jnp.mean(yg, axis=-1, keepdims=True)      # XLU cross-lane reduce
            d = yg - mu
            var = jnp.mean(d * d, axis=-1, keepdims=True)  # biased variance (PyTorch LN)
            halves.append(d * lax.rsqrt(var + _LN_EPS))    # EUP rsqrt
        row = jnp.concatenate(halves, axis=-1)             # (R, W, 2*Cq), order (p2, c)
        o_ref[:, p1, :, :] = (row * gamma + beta).astype(o_ref.dtype)


def _choose_rows_per_step(BH, W, C, x_itemsize, mxu_itemsize, out_itemsize, budget_bytes):
    """Largest divisor R of B*H whose pipelined working set fits the VMEM budget.

    Per (b, h) row of W tokens:
      - double-buffered input tile (native dtype) : 2 * (W*C)   * x_itemsize
      - in-kernel MXU-dtype cast copy              :     (W*C)   * mxu_itemsize
      - double-buffered output tile                : 2 * (2*W*C) * out_itemsize
      - in-kernel f32 temporaries (y + scratch)    : ~3 * (2*W*C) * 4
    plus the (conservatively double-counted) resident weight.
    """
    per_row = (2 * W * C * x_itemsize
               + W * C * mxu_itemsize
               + 2 * (2 * W * C) * out_itemsize
               + 3 * (2 * W * C) * 4)
    fixed = 2 * (C * 2 * C) * mxu_itemsize + 4 * (2 * C) * 4
    target = max(1, min(BH, max(budget_bytes - fixed, per_row) // per_row))
    for r in range(int(target), 0, -1):
        # R must divide B*H; the (R*W, C) input block also needs sublane alignment
        # unless it spans the whole array.
        if BH % r == 0 and ((r * W) % 8 == 0 or r == BH):
            return r
    # TODO(synk): pad B*H (or add a when-guarded tail) instead of this single-step
    # fallback when no aligned divisor exists (e.g. prime B*H with odd W).
    return BH


def patch_expand(x, w_expand, gamma, beta, input_resolution, *,
                 rows_per_step=None, mxu_dtype=jnp.bfloat16,
                 vmem_limit_bytes=40 * 1024 * 1024):
    """Pallas implementation of PatchExpand.forward.

    x:        (B, H*W, C)
    w_expand: (2C, C)   nn.Linear(C, 2C, bias=False) weight (y = x @ W.T)
    gamma:    (C//2,)   LayerNorm weight
    beta:     (C//2,)   LayerNorm bias
    returns   (B, 4*H*W, C//2)
    """
    H, W = input_resolution
    B, L, C = x.shape
    assert L == H * W, "input feature has wrong size"
    assert C % 2 == 0
    Cq = C // 2
    BH = B * H
    N = B * L

    x_itemsize = jnp.dtype(x.dtype).itemsize
    mxu_itemsize = jnp.dtype(mxu_dtype).itemsize
    out_dtype = x.dtype
    out_itemsize = jnp.dtype(out_dtype).itemsize

    if rows_per_step is None:
        # Keep the estimated working set well under the tightest per-generation VMEM
        # (v7x: 64 MiB physical / 32 MiB scoped default; v5e's 16 MiB scoped default
        # is raised via vmem_limit_bytes below).
        budget = (vmem_limit_bytes * 3) // 5
        rows_per_step = _choose_rows_per_step(
            BH, W, C, x_itemsize, mxu_itemsize, out_itemsize, budget)
    R = int(rows_per_step)
    assert BH % R == 0, "rows_per_step must divide B*H"

    # Activation stays in its native dtype (cast happens per-tile inside the kernel).
    x2 = x.reshape(N, C)
    # Weight: transposed + cast once in the wrapper; grid-invariant, fetched once and
    # held resident in VMEM at half the f32 footprint.
    w_t = jnp.asarray(w_expand).T.astype(mxu_dtype)                     # (C, 2C)
    gamma2 = jnp.concatenate([gamma, gamma]).reshape(1, C).astype(jnp.float32)
    beta2 = jnp.concatenate([beta, beta]).reshape(1, C).astype(jnp.float32)

    kernel = functools.partial(_patch_expand_kernel, mxu_dtype=mxu_dtype)

    out = pl.pallas_call(
        kernel,
        out_shape=jax.ShapeDtypeStruct((BH, 2, W, C), out_dtype),
        grid_spec=pltpu.PrefetchScalarGridSpec(
            num_scalar_prefetch=0,
            grid=(BH // R,),
            in_specs=[
                pl.BlockSpec((R * W, C), lambda i: (i, 0)),
                pl.BlockSpec((C, 2 * C), lambda i: (0, 0)),   # grid-invariant: fetched once
                pl.BlockSpec((1, C), lambda i: (0, 0)),
                pl.BlockSpec((1, C), lambda i: (0, 0)),
            ],
            # NOTE: output lane dim is C (= 2*Cq); lane-dense for production Swin C >= 128.
            out_specs=pl.BlockSpec((R, 2, W, C), lambda i: (i, 0, 0, 0)),
        ),
        compiler_params=pltpu.CompilerParams(
            dimension_semantics=("parallel",),
            vmem_limit_bytes=vmem_limit_bytes,
        ),
    )(x2, w_t, gamma2, beta2)

    # (BH, 2, W, C) is already in (b, h, p1, w, p2, c) memory order -> free reshape.
    return out.reshape(B, 4 * H * W, Cq)


if __name__ == "__main__":
    B, H, W, dim = 2, 8, 8, 32
    key = jax.random.PRNGKey(0)
    k1, k2, k3, k4 = jax.random.split(key, 4)

    x = jax.random.normal(k1, (B, H * W, dim), dtype=jnp.float32)
    # Shapes match nn.Linear(dim, 2*dim, bias=False) and nn.LayerNorm(dim // 2).
    w_expand = jax.random.normal(k2, (2 * dim, dim), dtype=jnp.float32) / jnp.sqrt(dim)
    gamma = 1.0 + 0.1 * jax.random.normal(k3, (dim // 2,), dtype=jnp.float32)
    beta = 0.1 * jax.random.normal(k4, (dim // 2,), dtype=jnp.float32)

    # Auto tile (collapses to a single grid step at this toy size) ...
    out = jax.block_until_ready(patch_expand(x, w_expand, gamma, beta, (H, W)))
    # ... and an explicit multi-step grid to exercise the pipelined path.
    out_multi = jax.block_until_ready(
        patch_expand(x, w_expand, gamma, beta, (H, W), rows_per_step=4))

    # Pure-JAX reference using the same bf16 MXU operands (LayerNorm in f32).
    xb = x.astype(jnp.bfloat16).astype(jnp.float32)
    wb = jnp.asarray(w_expand).astype(jnp.bfloat16).astype(jnp.float32)
    y = xb @ wb.T                                                     # (B, L, 2*dim)
    y = y.reshape(B, H, W, 2, 2, dim // 2).transpose(0, 1, 3, 2, 4, 5)
    y = y.reshape(B, 4 * H * W, dim // 2)
    mu = y.mean(-1, keepdims=True)
    var = ((y - mu) ** 2).mean(-1, keepdims=True)
    ref = (y - mu) / jnp.sqrt(var + _LN_EPS) * gamma + beta

    assert out.shape == (B, 4 * H * W, dim // 2)
    assert jnp.allclose(out, ref, atol=2e-3, rtol=2e-3)
    assert jnp.allclose(out_multi, ref, atol=2e-3, rtol=2e-3)
    print("KERNEL_OK")
</pallas_src>

<mosaic_0001>
module attributes {stable_mosaic.version = 11 : i64} {
  func.func @_patch_expand_kernel(%arg0: i32, %arg1: memref<128x32xf32, #tpu.memory_space<vmem>>, %arg2: memref<32x64xbf16, #tpu.memory_space<vmem>>, %arg3: memref<1x32xf32, #tpu.memory_space<vmem>>, %arg4: memref<1x32xf32, #tpu.memory_space<vmem>>, %arg5: memref<16x2x8x32xf32, #tpu.memory_space<vmem>>) attributes {dimension_semantics = [#tpu.dimension_semantics<parallel>], iteration_bounds = array<i64: 1>, scalar_prefetch = 0 : i64, scratch_operands = 0 : i64, tpu.core_type = #tpu.core_type<tc>, window_params = [{transform_indices = @transform_0, window_bounds = array<i64: 128, 32>}, {pipeline_mode = #tpu.pipeline_mode<synchronous>, transform_indices = @transform_1, window_bounds = array<i64: 32, 64>}, {pipeline_mode = #tpu.pipeline_mode<synchronous>, transform_indices = @transform_2, window_bounds = array<i64: 1, 32>}, {pipeline_mode = #tpu.pipeline_mode<synchronous>, transform_indices = @transform_3, window_bounds = array<i64: 1, 32>}, {transform_indices = @transform_4, window_bounds = array<i64: 16, 2, 8, 32>}]} {
    %c0 = arith.constant 0 : index
    %c0_0 = arith.constant 0 : index
    %0 = vector.load %arg1[%c0, %c0_0] : memref<128x32xf32, #tpu.memory_space<vmem>>, vector<128x32xf32>
    %1 = arith.truncf %0 : vector<128x32xf32> to vector<128x32xbf16>
    %c0_1 = arith.constant 0 : index
    %c0_2 = arith.constant 0 : index
    %2 = vector.load %arg2[%c0_1, %c0_2] : memref<32x64xbf16, #tpu.memory_space<vmem>>, vector<32x64xbf16>
    %cst = arith.constant dense<0.000000e+00> : vector<128x64xf32>
    %3 = tpu.matmul %1, %2, %cst {dimension_numbers = #tpu.dot_dimension_numbers<[1], [0], [0], [1], [0, 0, 1, 1], [], []>} : vector<128x32xbf16>, vector<32x64xbf16>, vector<128x64xf32> -> vector<128x64xf32>
    %4 = vector.shape_cast %3 : vector<128x64xf32> to vector<16x8x64xf32>
    %c0_3 = arith.constant 0 : index
    %c0_4 = arith.constant 0 : index
    %5 = vector.load %arg3[%c0_3, %c0_4] : memref<1x32xf32, #tpu.memory_space<vmem>>, vector<1x32xf32>
    %c0_5 = arith.constant 0 : index
    %c0_6 = arith.constant 0 : index
    %6 = vector.load %arg4[%c0_5, %c0_6] : memref<1x32xf32, #tpu.memory_space<vmem>>, vector<1x32xf32>
    %7 = vector.extract_strided_slice %4 {offsets = [0, 0, 0], sizes = [16, 8, 16], strides = [1, 1, 1]} : vector<16x8x64xf32> to vector<16x8x16xf32>
    %cst_7 = arith.constant dense<0.000000e+00> : vector<16x8xf32>
    %8 = vector.multi_reduction <add>, %7, %cst_7 [2] : vector<16x8x16xf32> to vector<16x8xf32>
    %9 = vector.shape_cast %8 : vector<16x8xf32> to vector<16x8x1xf32>
    %cst_8 = arith.constant 1.600000e+01 : f32
    %10 = vector.broadcast %cst_8 : f32 to vector<16x8x1xf32>
    %11 = arith.divf %9, %10 : vector<16x8x1xf32>
    %12 = vector.broadcast %11 : vector<16x8x1xf32> to vector<16x8x16xf32>
    %13 = arith.subf %7, %12 : vector<16x8x16xf32>
    %14 = arith.mulf %13, %13 : vector<16x8x16xf32>
    %cst_9 = arith.constant dense<0.000000e+00> : vector<16x8xf32>
    %15 = vector.multi_reduction <add>, %14, %cst_9 [2] : vector<16x8x16xf32> to vector<16x8xf32>
    %16 = vector.shape_cast %15 : vector<16x8xf32> to vector<16x8x1xf32>
    %cst_10 = arith.constant 1.600000e+01 : f32
    %17 = vector.broadcast %cst_10 : f32 to vector<16x8x1xf32>
    %18 = arith.divf %16, %17 : vector<16x8x1xf32>
    %cst_11 = arith.constant 9.99999974E-6 : f32
    %19 = vector.broadcast %cst_11 : f32 to vector<16x8x1xf32>
    %20 = arith.addf %18, %19 : vector<16x8x1xf32>
    %21 = math.rsqrt %20 : vector<16x8x1xf32>
    %22 = vector.broadcast %21 : vector<16x8x1xf32> to vector<16x8x16xf32>
    %23 = arith.mulf %13, %22 : vector<16x8x16xf32>
    %24 = vector.extract_strided_slice %4 {offsets = [0, 0, 16], sizes = [16, 8, 16], strides = [1, 1, 1]} : vector<16x8x64xf32> to vector<16x8x16xf32>
    %cst_12 = arith.constant dense<0.000000e+00> : vector<16x8xf32>
    %25 = vector.multi_reduction <add>, %24, %cst_12 [2] : vector<16x8x16xf32> to vector<16x8xf32>
    %26 = vector.shape_cast %25 : vector<16x8xf32> to vector<16x8x1xf32>
    %cst_13 = arith.constant 1.600000e+01 : f32
    %27 = vector.broadcast %cst_13 : f32 to vector<16x8x1xf32>
    %28 = arith.divf %26, %27 : vector<16x8x1xf32>
    %29 = vector.broadcast %28 : vector<16x8x1xf32> to vector<16x8x16xf32>
    %30 = arith.subf %24, %29 : vector<16x8x16xf32>
    %31 = arith.mulf %30, %30 : vector<16x8x16xf32>
    %cst_14 = arith.constant dense<0.000000e+00> : vector<16x8xf32>
    %32 = vector.multi_reduction <add>, %31, %cst_14 [2] : vector<16x8x16xf32> to vector<16x8xf32>
    %33 = vector.shape_cast %32 : vector<16x8xf32> to vector<16x8x1xf32>
    %cst_15 = arith.constant 1.600000e+01 : f32
    %34 = vector.broadcast %cst_15 : f32 to vector<16x8x1xf32>
    %35 = arith.divf %33, %34 : vector<16x8x1xf32>
    %cst_16 = arith.constant 9.99999974E-6 : f32
    %36 = vector.broadcast %cst_16 : f32 to vector<16x8x1xf32>
    %37 = arith.addf %35, %36 : vector<16x8x1xf32>
    %38 = math.rsqrt %37 : vector<16x8x1xf32>
    %39 = vector.broadcast %38 : vector<16x8x1xf32> to vector<16x8x16xf32>
    %40 = arith.mulf %30, %39 : vector<16x8x16xf32>
    %41 = tpu.concatenate %23, %40 in 2 : vector<16x8x16xf32>, vector<16x8x16xf32> -> vector<16x8x32xf32>
    %42 = vector.shape_cast %5 : vector<1x32xf32> to vector<1x1x32xf32>
    %43 = vector.broadcast %42 : vector<1x1x32xf32> to vector<16x8x32xf32>
    %44 = arith.mulf %41, %43 : vector<16x8x32xf32>
    %45 = vector.shape_cast %6 : vector<1x32xf32> to vector<1x1x32xf32>
    %46 = vector.broadcast %45 : vector<1x1x32xf32> to vector<16x8x32xf32>
    %47 = arith.addf %44, %46 : vector<16x8x32xf32>
    %c0_17 = arith.constant 0 : index
    %c0_18 = arith.constant 0 : index
    %c0_19 = arith.constant 0 : index
    %c0_20 = arith.constant 0 : index
    %48 = vector.load %arg5[%c0_17, %c0_18, %c0_19, %c0_20] : memref<16x2x8x32xf32, #tpu.memory_space<vmem>>, vector<16x1x8x32xf32>
    %49 = vector.shape_cast %48 : vector<16x1x8x32xf32> to vector<16x8x32xf32>
    %50 = vector.shape_cast %47 : vector<16x8x32xf32> to vector<16x1x8x32xf32>
    tpu.vector_store %arg5[%c0_17, %c0_18, %c0_19, %c0_20], %50 {strides = array<i32>} : memref<16x2x8x32xf32, #tpu.memory_space<vmem>>, vector<16x1x8x32xf32>,
    %51 = vector.extract_strided_slice %4 {offsets = [0, 0, 32], sizes = [16, 8, 16], strides = [1, 1, 1]} : vector<16x8x64xf32> to vector<16x8x16xf32>
    %cst_21 = arith.constant dense<0.000000e+00> : vector<16x8xf32>
    %52 = vector.multi_reduction <add>, %51, %cst_21 [2] : vector<16x8x16xf32> to vector<16x8xf32>
    %53 = vector.shape_cast %52 : vector<16x8xf32> to vector<16x8x1xf32>
    %cst_22 = arith.constant 1.600000e+01 : f32
    %54 = vector.broadcast %cst_22 : f32 to vector<16x8x1xf32>
    %55 = arith.divf %53, %54 : vector<16x8x1xf32>
    %56 = vector.broadcast %55 : vector<16x8x1xf32> to vector<16x8x16xf32>
    %57 = arith.subf %51, %56 : vector<16x8x16xf32>
    %58 = arith.mulf %57, %57 : vector<16x8x16xf32>
    %cst_23 = arith.constant dense<0.000000e+00> : vector<16x8xf32>
    %59 = vector.multi_reduction <add>, %58, %cst_23 [2] : vector<16x8x16xf32> to vector<16x8xf32>
    %60 = vector.shape_cast %59 : vector<16x8xf32> to vector<16x8x1xf32>
    %cst_24 = arith.constant 1.600000e+01 : f32
    %61 = vector.broadcast %cst_24 : f32 to vector<16x8x1xf32>
    %62 = arith.divf %60, %61 : vector<16x8x1xf32>
    %cst_25 = arith.constant 9.99999974E-6 : f32
    %63 = vector.broadcast %cst_25 : f32 to vector<16x8x1xf32>
    %64 = arith.addf %62, %63 : vector<16x8x1xf32>
    %65 = math.rsqrt %64 : vector<16x8x1xf32>
    %66 = vector.broadcast %65 : vector<16x8x1xf32> to vector<16x8x16xf32>
    %67 = arith.mulf %57, %66 : vector<16x8x16xf32>
    %68 = vector.extract_strided_slice %4 {offsets = [0, 0, 48], sizes = [16, 8, 16], strides = [1, 1, 1]} : vector<16x8x64xf32> to vector<16x8x16xf32>
    %cst_26 = arith.constant dense<0.000000e+00> : vector<16x8xf32>
    %69 = vector.multi_reduction <add>, %68, %cst_26 [2] : vector<16x8x16xf32> to vector<16x8xf32>
    %70 = vector.shape_cast %69 : vector<16x8xf32> to vector<16x8x1xf32>
    %cst_27 = arith.constant 1.600000e+01 : f32
    %71 = vector.broadcast %cst_27 : f32 to vector<16x8x1xf32>
    %72 = arith.divf %70, %71 : vector<16x8x1xf32>
    %73 = vector.broadcast %72 : vector<16x8x1xf32> to vector<16x8x16xf32>
    %74 = arith.subf %68, %73 : vector<16x8x16xf32>
    %75 = arith.mulf %74, %74 : vector<16x8x16xf32>
    %cst_28 = arith.constant dense<0.000000e+00> : vector<16x8xf32>
    %76 = vector.multi_reduction <add>, %75, %cst_28 [2] : vector<16x8x16xf32> to vector<16x8xf32>
    %77 = vector.shape_cast %76 : vector<16x8xf32> to vector<16x8x1xf32>
    %cst_29 = arith.constant 1.600000e+01 : f32
    %78 = vector.broadcast %cst_29 : f32 to vector<16x8x1xf32>
    %79 = arith.divf %77, %78 : vector<16x8x1xf32>
    %cst_30 = arith.constant 9.99999974E-6 : f32
    %80 = vector.broadcast %cst_30 : f32 to vector<16x8x1xf32>
    %81 = arith.addf %79, %80 : vector<16x8x1xf32>
    %82 = math.rsqrt %81 : vector<16x8x1xf32>
    %83 = vector.broadcast %82 : vector<16x8x1xf32> to vector<16x8x16xf32>
    %84 = arith.mulf %74, %83 : vector<16x8x16xf32>
    %85 = tpu.concatenate %67, %84 in 2 : vector<16x8x16xf32>, vector<16x8x16xf32> -> vector<16x8x32xf32>
    %86 = vector.shape_cast %5 : vector<1x32xf32> to vector<1x1x32xf32>
    %87 = vector.broadcast %86 : vector<1x1x32xf32> to vector<16x8x32xf32>
    %88 = arith.mulf %85, %87 : vector<16x8x32xf32>
    %89 = vector.shape_cast %6 : vector<1x32xf32> to vector<1x1x32xf32>
    %90 = vector.broadcast %89 : vector<1x1x32xf32> to vector<16x8x32xf32>
    %91 = arith.addf %88, %90 : vector<16x8x32xf32>
    %c0_31 = arith.constant 0 : index
    %c1 = arith.constant 1 : index
    %c0_32 = arith.constant 0 : index
    %c0_33 = arith.constant 0 : index
    %92 = vector.load %arg5[%c0_31, %c1, %c0_32, %c0_33] : memref<16x2x8x32xf32, #tpu.memory_space<vmem>>, vector<16x1x8x32xf32>
    %93 = vector.shape_cast %92 : vector<16x1x8x32xf32> to vector<16x8x32xf32>
    %94 = vector.shape_cast %91 : vector<16x8x32xf32> to vector<16x1x8x32xf32>
    tpu.vector_store %arg5[%c0_31, %c1, %c0_32, %c0_33], %94 {strides = array<i32>} : memref<16x2x8x32xf32, #tpu.memory_space<vmem>>, vector<16x1x8x32xf32>,
    return
  }
  func.func @transform_0(%arg0: i32) -> (i32, i32) {
    %c0_i32 = arith.constant 0 : i32
    %c0_i32_0 = arith.constant 0 : i32
    return %arg0, %c0_i32 : i32, i32
  }
  func.func @transform_1(%arg0: i32) -> (i32, i32) {
    %c0_i32 = arith.constant 0 : i32
    %c0_i32_0 = arith.constant 0 : i32
    %c0_i32_1 = arith.constant 0 : i32
    return %c0_i32, %c0_i32_0 : i32, i32
  }
  func.func @transform_2(%arg0: i32) -> (i32, i32) {
    %c0_i32 = arith.constant 0 : i32
    %c0_i32_0 = arith.constant 0 : i32
    %c0_i32_1 = arith.constant 0 : i32
    return %c0_i32, %c0_i32_0 : i32, i32
  }
  func.func @transform_3(%arg0: i32) -> (i32, i32) {
    %c0_i32 = arith.constant 0 : i32
    %c0_i32_0 = arith.constant 0 : i32
    %c0_i32_1 = arith.constant 0 : i32
    return %c0_i32, %c0_i32_0 : i32, i32
  }
  func.func @transform_4(%arg0: i32) -> (i32, i32, i32, i32) {
    %c0_i32 = arith.constant 0 : i32
    %c0_i32_0 = arith.constant 0 : i32
    %c0_i32_1 = arith.constant 0 : i32
    %c0_i32_2 = arith.constant 0 : i32
    return %arg0, %c0_i32, %c0_i32_0, %c0_i32_1 : i32, i32, i32, i32
  }
}

</mosaic_0001>

<llo_original>
// kernel: tpu_custom_call.1
$region0: #{tpu_custom_call.1}
  #allocation0 [shape = 'u32[]', space=smem, size = 0x4, offset = 0x4, fixed_abs, tag = 'smem constant byte address 0x4 - core index']
  #allocation1 [shape = 'u32[72,128]{1,0:T(1,128)}', space=vmem, size = 0x9000, scoped, tag = 'internal scratch']
  %s0 = inlined_call_operand.vmem [shape: f32[128,32], index: 0, kind: input, shape index: {}]
  %s1 = inlined_call_operand.vmem [shape: bf16[32,64], index: 1, kind: input, shape index: {}]
  %s2 = inlined_call_operand.vmem [shape: f32[1,32], index: 2, kind: input, shape index: {}]
  %s3 = inlined_call_operand.vmem [shape: f32[1,32], index: 3, kind: input, shape index: {}]
  %s4 = inlined_call_operand.hbm [shape: f32[16,2,8,32], index: 4, kind: output, shape index: {}]
  %s5 = sld [smem:[#allocation0]]
  $region26: #{tpu_custom_call.1} parent=0
    _
  %s7 = ssub.s32 1, %s5
  %s8 = scalar_select 0, %s7, %s5
  $region1: #{tpu_custom_call.1} parent=0
    #allocation2 [shape = 'u8[131072]{0}', space=vmem, size = 0x20000, scoped, tag = 'output window, operand 0, single buffered']
    #allocation3 [shape = 's32[1]{0}', space=sflag, size = 0x4, scoped, tag = 'scoped memory for tpu_custom_call.1']
    %9 = vsyncpa [#allocation3], 0
    // Predicated region
    $region2: #{tpu_custom_call.1} parent=1 // pred_check
      _
    $region3: #{tpu_custom_call.1} parent=1 // pred_check_branch
      %11 = sbr.rel (0) target = $region5
    $region4: #{tpu_custom_call.1} parent=1 // pred_region
      _
    $region5: #{tpu_custom_call.1} parent=1 // pred_fallthru
      _
    // Predicated region
    $region6: #{tpu_custom_call.1} parent=1 // pred_check
      _
    $region7: #{tpu_custom_call.1} parent=1 // pred_check_branch
      %13 = sbr.rel (0) target = $region9
    $region8: #{tpu_custom_call.1} parent=1 // pred_region
      _
    $region9: #{tpu_custom_call.1} parent=1 // pred_fallthru
      _
    // Predicated region
    $region10: #{tpu_custom_call.1} parent=1 // pred_check
      _
    $region11: #{tpu_custom_call.1} parent=1 // pred_check_branch
      %15 = sbr.rel (0) target = $region13
    $region12: #{tpu_custom_call.1} parent=1 // pred_region
      _
    $region13: #{tpu_custom_call.1} parent=1 // pred_fallthru
      _
    // Predicated region
    $region14: #{tpu_custom_call.1} parent=1 // pred_check
      _
    $region15: #{tpu_custom_call.1} parent=1 // pred_check_branch
      %17 = sbr.rel (0) target = $region17
    $region16: #{tpu_custom_call.1} parent=1 // pred_region
      _
    $region17: #{tpu_custom_call.1} parent=1 // pred_fallthru
      _
    %v19 = vld [vmem:[%s0] sm:$0xff]
    %v20 = vld [vmem:[%s0 + $0x8] sm:$0xff]
    %v21 = vld [vmem:[%s0 + $0x10] sm:$0xff]
    %v22 = vld [vmem:[%s0 + $0x18] sm:$0xff]
    %v23 = vld [vmem:[%s0 + $0x20] sm:$0xff]
    %v24 = vld [vmem:[%s0 + $0x28] sm:$0xff]
    %v25 = vld [vmem:[%s0 + $0x30] sm:$0xff]
    %v26 = vld [vmem:[%s0 + $0x38] sm:$0xff]
    %v27 = vld [vmem:[%s0 + $0x40] sm:$0xff]
    %v28 = vld [vmem:[%s0 + $0x48] sm:$0xff]
    %v29 = vld [vmem:[%s0 + $0x50] sm:$0xff]
    %v30 = vld [vmem:[%s0 + $0x58] sm:$0xff]
    %v31 = vld [vmem:[%s0 + $0x60] sm:$0xff]
    %v32 = vld [vmem:[%s0 + $0x68] sm:$0xff]
    %v33 = vld [vmem:[%s0 + $0x70] sm:$0xff]
    %v34 = vld [vmem:[%s0 + $0x78] sm:$0xff]
    %v35 = vpack.c.bf16 %v20, %v19
    %v36 = vpack.c.bf16 %v22, %v21
    %v37 = vpack.c.bf16 %v24, %v23
    %v38 = vpack.c.bf16 %v26, %v25
    %v39 = vpack.c.bf16 %v28, %v27
    %v40 = vpack.c.bf16 %v30, %v29
    %v41 = vpack.c.bf16 %v32, %v31
    %v42 = vpack.c.bf16 %v34, %v33
    %v43 = vld [vmem:[%s1] sm:$0xf]
    %v44 = vld [vmem:[%s1 + $0x4] sm:$0xf]
    %v45 = vld [vmem:[%s1 + $0x8] sm:$0xf]
    %v46 = vld [vmem:[%s1 + $0xc] sm:$0xf]
    %v51 = vunpack.c.l.b16 %v43
    %v52 = vunpack.c.l.b16 %v44
    %v53 = vunpack.c.l.b16 %v45
    %v54 = vunpack.c.l.b16 %v46
    %v55 = vpack.c.b16 %v52, %v51
    %v56 = vpack.c.b16 %v54, %v53
    %vm59 = vcmask 261120
    %v61 = vsel %vm59, %v35, 0
    %v64 = vsel %vm59, %v36, 0
    %v67 = vsel %vm59, %v37, 0
    %v70 = vsel %vm59, %v38, 0
    %v73 = vsel %vm59, %v39, 0
    %v76 = vsel %vm59, %v40, 0
    %v79 = vsel %vm59, %v41, 0
    %v82 = vsel %vm59, %v42, 0
    %84 = vmatpush.bf16.msra.mxu0 0
    %85 = vmatpush.bf16.msra.mxu0 0
    %86 = vmatpush.bf16.msra.mxu0 0
    %87 = vmatpush.bf16.msra.mxu0 0
    %88 = vmatpush.bf16.msra.mxu0 0
    %89 = vmatpush.bf16.msra.mxu0 0
    %90 = vmatpush.bf16.msra.mxu0 %v56
    %91 = vmatpush.bf16.msra.mxu0 %v55
    %92 = vmatmul.bf16.gmra.mxu0 %v61
    %v93 = vpop.f32.mrf.mxu0
    %v94 = vadd.f32 0.0, %v93
    %v95 = vpop.f32.mrf.mxu0
    %v96 = vadd.f32 0.0, %v95
    %97 = vmatmul.bf16.gmra.mxu0 %v64
    %v98 = vpop.f32.mrf.mxu0
    %v99 = vadd.f32 0.0, %v98
    %v100 = vpop.f32.mrf.mxu0
    %v101 = vadd.f32 0.0, %v100
    %102 = vmatmul.bf16.gmra.mxu0 %v67
    %v103 = vpop.f32.mrf.mxu0
    %v104 = vadd.f32 0.0, %v103
    %v105 = vpop.f32.mrf.mxu0
    %v106 = vadd.f32 0.0, %v105
    %107 = vmatmul.bf16.gmra.mxu0 %v70
    %v108 = vpop.f32.mrf.mxu0
    %v109 = vadd.f32 0.0, %v108
    %v110 = vpop.f32.mrf.mxu0
    %v111 = vadd.f32 0.0, %v110
    %112 = vmatmul.bf16.gmra.mxu0 %v73
    %v113 = vpop.f32.mrf.mxu0
    %v114 = vadd.f32 0.0, %v113
    %v115 = vpop.f32.mrf.mxu0
    %v116 = vadd.f32 0.0, %v115
    %117 = vmatmul.bf16.gmra.mxu0 %v76
    %v118 = vpop.f32.mrf.mxu0
    %v119 = vadd.f32 0.0, %v118
    %v120 = vpop.f32.mrf.mxu0
    %v121 = vadd.f32 0.0, %v120
    %122 = vmatmul.bf16.gmra.mxu0 %v79
    %v123 = vpop.f32.mrf.mxu0
    %v124 = vadd.f32 0.0, %v123
    %v125 = vpop.f32.mrf.mxu0
    %v126 = vadd.f32 0.0, %v125
    %127 = vmatmul.bf16.gmra.mxu0 %v82
    %v128 = vpop.f32.mrf.mxu0
    %v129 = vadd.f32 0.0, %v128
    %v130 = vpop.f32.mrf.mxu0
    %v131 = vadd.f32 0.0, %v130
    %132 = vdwg.mxu0
    %v133 = vld [vmem:[%s2] sm:$0x1]
    %v134 = vld [vmem:[%s3] sm:$0x1]
    %vm135 = vcmask 130048
    %v136 = vsel %vm135, %v94, 0.0
    %137 = vadd.xlane.f32.xlu0 %v136
    %v138 = vpop.xlane.xlu0 %137
    %v139 = vsel %vm135, %v96, 0.0
    %140 = vadd.xlane.f32.xlu0 %v139
    %v141 = vpop.xlane.xlu0 %140
    %v142 = vsel %vm135, %v99, 0.0
    %143 = vadd.xlane.f32.xlu0 %v142
    %v144 = vpop.xlane.xlu0 %143
    %v145 = vsel %vm135, %v101, 0.0
    %146 = vadd.xlane.f32.xlu0 %v145
    %v147 = vpop.xlane.xlu0 %146
    %v148 = vsel %vm135, %v104, 0.0
    %149 = vadd.xlane.f32.xlu0 %v148
    %v150 = vpop.xlane.xlu0 %149
    %v151 = vsel %vm135, %v106, 0.0
    %152 = vadd.xlane.f32.xlu0 %v151
    %v153 = vpop.xlane.xlu0 %152
    %v154 = vsel %vm135, %v109, 0.0
    %155 = vadd.xlane.f32.xlu0 %v154
    %v156 = vpop.xlane.xlu0 %155
    %v157 = vsel %vm135, %v111, 0.0
    %158 = vadd.xlane.f32.xlu0 %v157
    %v159 = vpop.xlane.xlu0 %158
    %v160 = vsel %vm135, %v114, 0.0
    %161 = vadd.xlane.f32.xlu0 %v160
    %v162 = vpop.xlane.xlu0 %161
    %v163 = vsel %vm135, %v116, 0.0
    %164 = vadd.xlane.f32.xlu0 %v163
    %v165 = vpop.xlane.xlu0 %164
    %v166 = vsel %vm135, %v119, 0.0
    %167 = vadd.xlane.f32.xlu0 %v166
    %v168 = vpop.xlane.xlu0 %167
    %v169 = vsel %vm135, %v121, 0.0
    %170 = vadd.xlane.f32.xlu0 %v169
    %v171 = vpop.xlane.xlu0 %170
    %v172 = vsel %vm135, %v124, 0.0
    %173 = vadd.xlane.f32.xlu0 %v172
    %v174 = vpop.xlane.xlu0 %173
    %v175 = vsel %vm135, %v126, 0.0
    %176 = vadd.xlane.f32.xlu0 %v175
    %v177 = vpop.xlane.xlu0 %176
    %v178 = vsel %vm135, %v129, 0.0
    %179 = vadd.xlane.f32.xlu0 %v178
    %v180 = vpop.xlane.xlu0 %179
    %v181 = vsel %vm135, %v131, 0.0
    %182 = vadd.xlane.f32.xlu0 %v181
    %v183 = vpop.xlane.xlu0 %182
    %v184 = vrcp.pop 16.0
    %v185 = vmul.f32 16.0, %v184
    %v186 = vsub.f32 1.0, %v185
    %v187 = vmul.f32 %v184, %v186
    %v188 = vadd.f32 %v184, %v187
    %vm189 = vweird.f32 %v184
    %v190 = vsel %vm189, %v184, %v188
    %v191 = vmul.f32 %v138, %v190
    %v192 = vmul.f32 %v141, %v190
    %v193 = vmul.f32 %v144, %v190
    %v194 = vmul.f32 %v147, %v190
    %v195 = vmul.f32 %v150, %v190
    %v196 = vmul.f32 %v153, %v190
    %v197 = vmul.f32 %v156, %v190
    %v198 = vmul.f32 %v159, %v190
    %v199 = vmul.f32 %v162, %v190
    %v200 = vmul.f32 %v165, %v190
    %v201 = vmul.f32 %v168, %v190
    %v202 = vmul.f32 %v171, %v190
    %v203 = vmul.f32 %v174, %v190
    %v204 = vmul.f32 %v177, %v190
    %v205 = vmul.f32 %v180, %v190
    %v206 = vmul.f32 %v183, %v190
    %v207 = vsub.f32 %v94, %v191
    %v208 = vsub.f32 %v96, %v192
    %v209 = vsub.f32 %v99, %v193
    %v210 = vsub.f32 %v101, %v194
    %v211 = vsub.f32 %v104, %v195
    %v212 = vsub.f32 %v106, %v196
    %v213 = vsub.f32 %v109, %v197
    %v214 = vsub.f32 %v111, %v198
    %v215 = vsub.f32 %v114, %v199
    %v216 = vsub.f32 %v116, %v200
    %v217 = vsub.f32 %v119, %v201
    %v218 = vsub.f32 %v121, %v202
    %v219 = vsub.f32 %v124, %v203
    %v220 = vsub.f32 %v126, %v204
    %v221 = vsub.f32 %v129, %v205
    %v222 = vsub.f32 %v131, %v206
    %v223 = vmul.f32 %v207, %v207
    %v224 = vmul.f32 %v208, %v208
    %v225 = vmul.f32 %v209, %v209
    %v226 = vmul.f32 %v210, %v210
    %v227 = vmul.f32 %v211, %v211
    %v228 = vmul.f32 %v212, %v212
    %v229 = vmul.f32 %v213, %v213
    %v230 = vmul.f32 %v214, %v214
    %v231 = vmul.f32 %v215, %v215
    %v232 = vmul.f32 %v216, %v216
    %v233 = vmul.f32 %v217, %v217
    %v234 = vmul.f32 %v218, %v218
    %v235 = vmul.f32 %v219, %v219
    %v236 = vmul.f32 %v220, %v220
    %v237 = vmul.f32 %v221, %v221
    %v238 = vmul.f32 %v222, %v222
    %v239 = vsel %vm135, %v223, 0.0
    %240 = vadd.xlane.f32.xlu0 %v239
    %v241 = vpop.xlane.xlu0 %240
    %v242 = vsel %vm135, %v224, 0.0
    %243 = vadd.xlane.f32.xlu0 %v242
    %v244 = vpop.xlane.xlu0 %243
    %v245 = vsel %vm135, %v225, 0.0
    %246 = vadd.xlane.f32.xlu0 %v245
    %v247 = vpop.xlane.xlu0 %246
    %v248 = vsel %vm135, %v226, 0.0
    %249 = vadd.xlane.f32.xlu0 %v248
    %v250 = vpop.xlane.xlu0 %249
    %v251 = vsel %vm135, %v227, 0.0
    %252 = vadd.xlane.f32.xlu0 %v251
    %v253 = vpop.xlane.xlu0 %252
    %v254 = vsel %vm135, %v228, 0.0
    %255 = vadd.xlane.f32.xlu0 %v254
    %v256 = vpop.xlane.xlu0 %255
    %v257 = vsel %vm135, %v229, 0.0
    %258 = vadd.xlane.f32.xlu0 %v257
    %v259 = vpop.xlane.xlu0 %258
    %v260 = vsel %vm135, %v230, 0.0
    %261 = vadd.xlane.f32.xlu0 %v260
    %v262 = vpop.xlane.xlu0 %261
    %v263 = vsel %vm135, %v231, 0.0
    %264 = vadd.xlane.f32.xlu0 %v263
    %v265 = vpop.xlane.xlu0 %264
    %v266 = vsel %vm135, %v232, 0.0
    %267 = vadd.xlane.f32.xlu0 %v266
    %v268 = vpop.xlane.xlu0 %267
    %v269 = vsel %vm135, %v233, 0.0
    %270 = vadd.xlane.f32.xlu0 %v269
    %v271 = vpop.xlane.xlu0 %270
    %v272 = vsel %vm135, %v234, 0.0
    %273 = vadd.xlane.f32.xlu0 %v272
    %v274 = vpop.xlane.xlu0 %273
    %v275 = vsel %vm135, %v235, 0.0
    %276 = vadd.xlane.f32.xlu0 %v275
    %v277 = vpop.xlane.xlu0 %276
    %v278 = vsel %vm135, %v236, 0.0
    %279 = vadd.xlane.f32.xlu0 %v278
    %v280 = vpop.xlane.xlu0 %279
    %v281 = vsel %vm135, %v237, 0.0
    %282 = vadd.xlane.f32.xlu0 %v281
    %v283 = vpop.xlane.xlu0 %282
    %v284 = vsel %vm135, %v238, 0.0
    %285 = vadd.xlane.f32.xlu0 %v284
    %v286 = vpop.xlane.xlu0 %285
    %v287 = vmul.f32 %v241, %v190
    %v288 = vmul.f32 %v244, %v190
    %v289 = vmul.f32 %v247, %v190
    %v290 = vmul.f32 %v250, %v190
    %v291 = vmul.f32 %v253, %v190
    %v292 = vmul.f32 %v256, %v190
    %v293 = vmul.f32 %v259, %v190
    %v294 = vmul.f32 %v262, %v190
    %v295 = vmul.f32 %v265, %v190
    %v296 = vmul.f32 %v268, %v190
    %v297 = vmul.f32 %v271, %v190
    %v298 = vmul.f32 %v274, %v190
    %v299 = vmul.f32 %v277, %v190
    %v300 = vmul.f32 %v280, %v190
    %v301 = vmul.f32 %v283, %v190
    %v302 = vmul.f32 %v286, %v190
    %v303 = vadd.f32 %v287, 1e-05
    %v304 = vadd.f32 %v288, 1e-05
    %v305 = vadd.f32 %v289, 1e-05
    %v306 = vadd.f32 %v290, 1e-05
    %v307 = vadd.f32 %v291, 1e-05
    %v308 = vadd.f32 %v292, 1e-05
    %v309 = vadd.f32 %v293, 1e-05
    %v310 = vadd.f32 %v294, 1e-05
    %v311 = vadd.f32 %v295, 1e-05
    %v312 = vadd.f32 %v296, 1e-05
    %v313 = vadd.f32 %v297, 1e-05
    %v314 = vadd.f32 %v298, 1e-05
    %v315 = vadd.f32 %v299, 1e-05
    %v316 = vadd.f32 %v300, 1e-05
    %v317 = vadd.f32 %v301, 1e-05
    %v318 = vadd.f32 %v302, 1e-05
    %v319 = vrsqrt.pop %v303
    %v320 = vmul.f32 %v319, %v303
    %v321 = vmul.f32 %v320, %v319
    %v322 = vmul.f32 0.5, %v321
    %v323 = vsub.f32 1.5, %v322
    %v324 = vmul.f32 %v319, %v323
    %vm325 = vweird.f32 %v303
    %vm326 = vweird.f32 %v319
    %vm327 = vmor %vm325, %vm326
    %v328 = vsel %vm327, %v319, %v324
    %v329 = vrsqrt.pop %v304
    %v330 = vmul.f32 %v329, %v304
    %v331 = vmul.f32 %v330, %v329
    %v332 = vmul.f32 0.5, %v331
    %v333 = vsub.f32 1.5, %v332
    %v334 = vmul.f32 %v329, %v333
    %vm335 = vweird.f32 %v304
    %vm336 = vweird.f32 %v329
    %vm337 = vmor %vm335, %vm336
    %v338 = vsel %vm337, %v329, %v334
    %v339 = vrsqrt.pop %v305
    %v340 = vmul.f32 %v339, %v305
    %v341 = vmul.f32 %v340, %v339
    %v342 = vmul.f32 0.5, %v341
    %v343 = vsub.f32 1.5, %v342
    %v344 = vmul.f32 %v339, %v343
    %vm345 = vweird.f32 %v305
    %vm346 = vweird.f32 %v339
    %vm347 = vmor %vm345, %vm346
    %v348 = vsel %vm347, %v339, %v344
    %v349 = vrsqrt.pop %v306
    %v350 = vmul.f32 %v349, %v306
    %v351 = vmul.f32 %v350, %v349
    %v352 = vmul.f32 0.5, %v351
    %v353 = vsub.f32 1.5, %v352
    %v354 = vmul.f32 %v349, %v353
    %vm355 = vweird.f32 %v306
    %vm356 = vweird.f32 %v349
    %vm357 = vmor %vm355, %vm356
    %v358 = vsel %vm357, %v349, %v354
    %v359 = vrsqrt.pop %v307
    %v360 = vmul.f32 %v359, %v307
    %v361 = vmul.f32 %v360, %v359
    %v362 = vmul.f32 0.5, %v361
    %v363 = vsub.f32 1.5, %v362
    %v364 = vmul.f32 %v359, %v363
    %vm365 = vweird.f32 %v307
    %vm366 = vweird.f32 %v359
    %vm367 = vmor %vm365, %vm366
    %v368 = vsel %vm367, %v359, %v364
    %v369 = vrsqrt.pop %v308
    %v370 = vmul.f32 %v369, %v308
    %v371 = vmul.f32 %v370, %v369
    %v372 = vmul.f32 0.5, %v371
    %v373 = vsub.f32 1.5, %v372
    %v374 = vmul.f32 %v369, %v373
    %vm375 = vweird.f32 %v308
    %vm376 = vweird.f32 %v369
    %vm377 = vmor %vm375, %vm376
    %v378 = vsel %vm377, %v369, %v374
    %v379 = vrsqrt.pop %v309
    %v380 = vmul.f32 %v379, %v309
    %v381 = vmul.f32 %v380, %v379
    %v382 = vmul.f32 0.5, %v381
    %v383 = vsub.f32 1.5, %v382
    %v384 = vmul.f32 %v379, %v383
    %vm385 = vweird.f32 %v309
    %vm386 = vweird.f32 %v379
    %vm387 = vmor %vm385, %vm386
    %v388 = vsel %vm387, %v379, %v384
    %v389 = vrsqrt.pop %v310
    %v390 = vmul.f32 %v389, %v310
    %v391 = vmul.f32 %v390, %v389
    %v392 = vmul.f32 0.5, %v391
    %v393 = vsub.f32 1.5, %v392
    %v394 = vmul.f32 %v389, %v393
    %vm395 = vweird.f32 %v310
    %vm396 = vweird.f32 %v389
    %vm397 = vmor %vm395, %vm396
    %v398 = vsel %vm397, %v389, %v394
    %v399 = vrsqrt.pop %v311
    %v400 = vmul.f32 %v399, %v311
    %v401 = vmul.f32 %v400, %v399
    %v402 = vmul.f32 0.5, %v401
    %v403 = vsub.f32 1.5, %v402
    %v404 = vmul.f32 %v399, %v403
    %vm405 = vweird.f32 %v311
    %vm406 = vweird.f32 %v399
    %vm407 = vmor %vm405, %vm406
    %v408 = vsel %vm407, %v399, %v404
    %v409 = vrsqrt.pop %v312
    %v410 = vmul.f32 %v409, %v312
    %v411 = vmul.f32 %v410, %v409
    %v412 = vmul.f32 0.5, %v411
    %v413 = vsub.f32 1.5, %v412
    %v414 = vmul.f32 %v409, %v413
    %vm415 = vweird.f32 %v312
    %vm416 = vweird.f32 %v409
    %vm417 = vmor %vm415, %vm416
    %v418 = vsel %vm417, %v409, %v414
    %v419 = vrsqrt.pop %v313
    %v420 = vmul.f32 %v419, %v313
    %v421 = vmul.f32 %v420, %v419
    %v422 = vmul.f32 0.5, %v421
    %v423 = vsub.f32 1.5, %v422
    %v424 = vmul.f32 %v419, %v423
    %vm425 = vweird.f32 %v313
    %vm426 = vweird.f32 %v419
    %vm427 = vmor %vm425, %vm426
    %v428 = vsel %vm427, %v419, %v424
    %v429 = vrsqrt.pop %v314
    %v430 = vmul.f32 %v429, %v314
    %v431 = vmul.f32 %v430, %v429
    %v432 = vmul.f32 0.5, %v431
    %v433 = vsub.f32 1.5, %v432
    %v434 = vmul.f32 %v429, %v433
    %vm435 = vweird.f32 %v314
    %vm436 = vweird.f32 %v429
    %vm437 = vmor %vm435, %vm436
    %v438 = vsel %vm437, %v429, %v434
    %v439 = vrsqrt.pop %v315
    %v440 = vmul.f32 %v439, %v315
    %v441 = vmul.f32 %v440, %v439
    %v442 = vmul.f32 0.5, %v441
    %v443 = vsub.f32 1.5, %v442
    %v444 = vmul.f32 %v439, %v443
    %vm445 = vweird.f32 %v315
    %vm446 = vweird.f32 %v439
    %vm447 = vmor %vm445, %vm446
    %v448 = vsel %vm447, %v439, %v444
    %v449 = vrsqrt.pop %v316
    %v450 = vmul.f32 %v449, %v316
    %v451 = vmul.f32 %v450, %v449
    %v452 = vmul.f32 0.5, %v451
    %v453 = vsub.f32 1.5, %v452
    %v454 = vmul.f32 %v449, %v453
    %vm455 = vweird.f32 %v316
    %vm456 = vweird.f32 %v449
    %vm457 = vmor %vm455, %vm456
    %v458 = vsel %vm457, %v449, %v454
    %v459 = vrsqrt.pop %v317
    %v460 = vmul.f32 %v459, %v317
    %v461 = vmul.f32 %v460, %v459
    %v462 = vmul.f32 0.5, %v461
    %v463 = vsub.f32 1.5, %v462
    %v464 = vmul.f32 %v459, %v463
    %vm465 = vweird.f32 %v317
    %vm466 = vweird.f32 %v459
    %vm467 = vmor %vm465, %vm466
    %v468 = vsel %vm467, %v459, %v464
    %v469 = vrsqrt.pop %v318
    %v470 = vmul.f32 %v469, %v318
    %v471 = vmul.f32 %v470, %v469
    %v472 = vmul.f32 0.5, %v471
    %v473 = vsub.f32 1.5, %v472
    %v474 = vmul.f32 %v469, %v473
    %vm475 = vweird.f32 %v318
    %vm476 = vweird.f32 %v469
    %vm477 = vmor %vm475, %vm476
    %v478 = vsel %vm477, %v469, %v474
    %v479 = vmul.f32 %v207, %v328
    %v480 = vmul.f32 %v208, %v338
    %v481 = vmul.f32 %v209, %v348
    %v482 = vmul.f32 %v210, %v358
    %v483 = vmul.f32 %v211, %v368
    %v484 = vmul.f32 %v212, %v378
    %v485 = vmul.f32 %v213, %v388
    %v486 = vmul.f32 %v214, %v398
    %v487 = vmul.f32 %v215, %v408
    %v488 = vmul.f32 %v216, %v418
    %v489 = vmul.f32 %v217, %v428
    %v490 = vmul.f32 %v218, %v438
    %v491 = vmul.f32 %v219, %v448
    %v492 = vmul.f32 %v220, %v458
    %v493 = vmul.f32 %v221, %v468
    %v494 = vmul.f32 %v222, %v478
    %511 = vrot.lane.b32.xlu0 %v94, 112
    %v512 = vpop.permute.xlu0 %511
    %513 = vrot.lane.b32.xlu0 %v96, 112
    %v514 = vpop.permute.xlu0 %513
    %515 = vrot.lane.b32.xlu0 %v99, 112
    %v516 = vpop.permute.xlu0 %515
    %517 = vrot.lane.b32.xlu0 %v101, 112
    %v518 = vpop.permute.xlu0 %517
    %519 = vrot.lane.b32.xlu0 %v104, 112
    %v520 = vpop.permute.xlu0 %519
    %521 = vrot.lane.b32.xlu0 %v106, 112
    %v522 = vpop.permute.xlu0 %521
    %523 = vrot.lane.b32.xlu0 %v109, 112
    %v524 = vpop.permute.xlu0 %523
    %525 = vrot.lane.b32.xlu0 %v111, 112
    %v526 = vpop.permute.xlu0 %525
    %527 = vrot.lane.b32.xlu0 %v114, 112
    %v528 = vpop.permute.xlu0 %527
    %529 = vrot.lane.b32.xlu0 %v116, 112
    %v530 = vpop.permute.xlu0 %529
    %531 = vrot.lane.b32.xlu0 %v119, 112
    %v532 = vpop.permute.xlu0 %531
    %533 = vrot.lane.b32.xlu0 %v121, 112
    %v534 = vpop.permute.xlu0 %533
    %535 = vrot.lane.b32.xlu0 %v124, 112
    %v536 = vpop.permute.xlu0 %535
    %537 = vrot.lane.b32.xlu0 %v126, 112
    %v538 = vpop.permute.xlu0 %537
    %539 = vrot.lane.b32.xlu0 %v129, 112
    %v540 = vpop.permute.xlu0 %539
    %541 = vrot.lane.b32.xlu0 %v131, 112
    %v542 = vpop.permute.xlu0 %541
    %v559 = vsel %vm135, %v512, 0.0
    %560 = vadd.xlane.f32.xlu0 %v559
    %v561 = vpop.xlane.xlu0 %560
    %v562 = vsel %vm135, %v514, 0.0
    %563 = vadd.xlane.f32.xlu0 %v562
    %v564 = vpop.xlane.xlu0 %563
    %v565 = vsel %vm135, %v516, 0.0
    %566 = vadd.xlane.f32.xlu0 %v565
    %v567 = vpop.xlane.xlu0 %566
    %v568 = vsel %vm135, %v518, 0.0
    %569 = vadd.xlane.f32.xlu0 %v568
    %v570 = vpop.xlane.xlu0 %569
    %v571 = vsel %vm135, %v520, 0.0
    %572 = vadd.xlane.f32.xlu0 %v571
    %v573 = vpop.xlane.xlu0 %572
    %v574 = vsel %vm135, %v522, 0.0
    %575 = vadd.xlane.f32.xlu0 %v574
    %v576 = vpop.xlane.xlu0 %575
    %v577 = vsel %vm135, %v524, 0.0
    %578 = vadd.xlane.f32.xlu0 %v577
    %v579 = vpop.xlane.xlu0 %578
    %v580 = vsel %vm135, %v526, 0.0
    %581 = vadd.xlane.f32.xlu0 %v580
    %v582 = vpop.xlane.xlu0 %581
    %v583 = vsel %vm135, %v528, 0.0
    %584 = vadd.xlane.f32.xlu0 %v583
    %v585 = vpop.xlane.xlu0 %584
    %v586 = vsel %vm135, %v530, 0.0
    %587 = vadd.xlane.f32.xlu0 %v586
    %v588 = vpop.xlane.xlu0 %587
    %v589 = vsel %vm135, %v532, 0.0
    %590 = vadd.xlane.f32.xlu0 %v589
    %v591 = vpop.xlane.xlu0 %590
    %v592 = vsel %vm135, %v534, 0.0
    %593 = vadd.xlane.f32.xlu0 %v592
    %v594 = vpop.xlane.xlu0 %593
    %v595 = vsel %vm135, %v536, 0.0
    %596 = vadd.xlane.f32.xlu0 %v595
    %v597 = vpop.xlane.xlu0 %596
    %v598 = vsel %vm135, %v538, 0.0
    %599 = vadd.xlane.f32.xlu0 %v598
    %v600 = vpop.xlane.xlu0 %599
    %v601 = vsel %vm135, %v540, 0.0
    %602 = vadd.xlane.f32.xlu0 %v601
    %v603 = vpop.xlane.xlu0 %602
    %v604 = vsel %vm135, %v542, 0.0
    %605 = vadd.xlane.f32.xlu0 %v604
    %v606 = vpop.xlane.xlu0 %605
    %v607 = vmul.f32 %v561, %v190
    %v608 = vmul.f32 %v564, %v190
    %v609 = vmul.f32 %v567, %v190
    %v610 = vmul.f32 %v570, %v190
    %v611 = vmul.f32 %v573, %v190
    %v612 = vmul.f32 %v576, %v190
    %v613 = vmul.f32 %v579, %v190
    %v614 = vmul.f32 %v582, %v190
    %v615 = vmul.f32 %v585, %v190
    %v616 = vmul.f32 %v588, %v190
    %v617 = vmul.f32 %v591, %v190
    %v618 = vmul.f32 %v594, %v190
    %v619 = vmul.f32 %v597, %v190
    %v620 = vmul.f32 %v600, %v190
    %v621 = vmul.f32 %v603, %v190
    %v622 = vmul.f32 %v606, %v190
    %v623 = vsub.f32 %v94, %v607
    %v624 = vsub.f32 %v96, %v608
    %v625 = vsub.f32 %v99, %v609
    %v626 = vsub.f32 %v101, %v610
    %v627 = vsub.f32 %v104, %v611
    %v628 = vsub.f32 %v106, %v612
    %v629 = vsub.f32 %v109, %v613
    %v630 = vsub.f32 %v111, %v614
    %v631 = vsub.f32 %v114, %v615
    %v632 = vsub.f32 %v116, %v616
    %v633 = vsub.f32 %v119, %v617
    %v634 = vsub.f32 %v121, %v618
    %v635 = vsub.f32 %v124, %v619
    %v636 = vsub.f32 %v126, %v620
    %v637 = vsub.f32 %v129, %v621
    %v638 = vsub.f32 %v131, %v622
    %v639 = vmul.f32 %v623, %v623
    %v640 = vmul.f32 %v624, %v624
    %v641 = vmul.f32 %v625, %v625
    %v642 = vmul.f32 %v626, %v626
    %v643 = vmul.f32 %v627, %v627
    %v644 = vmul.f32 %v628, %v628
    %v645 = vmul.f32 %v629, %v629
    %v646 = vmul.f32 %v630, %v630
    %v647 = vmul.f32 %v631, %v631
    %v648 = vmul.f32 %v632, %v632
    %v649 = vmul.f32 %v633, %v633
    %v650 = vmul.f32 %v634, %v634
    %v651 = vmul.f32 %v635, %v635
    %v652 = vmul.f32 %v636, %v636
    %v653 = vmul.f32 %v637, %v637
    %v654 = vmul.f32 %v638, %v638
    %671 = vrot.lane.b32.xlu0 %v639, 112
    %v672 = vpop.permute.xlu0 %671
    %673 = vrot.lane.b32.xlu0 %v640, 112
    %v674 = vpop.permute.xlu0 %673
    %675 = vrot.lane.b32.xlu0 %v641, 112
    %v676 = vpop.permute.xlu0 %675
    %677 = vrot.lane.b32.xlu0 %v642, 112
    %v678 = vpop.permute.xlu0 %677
    %679 = vrot.lane.b32.xlu0 %v643, 112
    %v680 = vpop.permute.xlu0 %679
    %681 = vrot.lane.b32.xlu0 %v644, 112
    %v682 = vpop.permute.xlu0 %681
    %683 = vrot.lane.b32.xlu0 %v645, 112
    %v684 = vpop.permute.xlu0 %683
    %685 = vrot.lane.b32.xlu0 %v646, 112
    %v686 = vpop.permute.xlu0 %685
    %687 = vrot.lane.b32.xlu0 %v647, 112
    %v688 = vpop.permute.xlu0 %687
    %689 = vrot.lane.b32.xlu0 %v648, 112
    %v690 = vpop.permute.xlu0 %689
    %691 = vrot.lane.b32.xlu0 %v649, 112
    %v692 = vpop.permute.xlu0 %691
    %693 = vrot.lane.b32.xlu0 %v650, 112
    %v694 = vpop.permute.xlu0 %693
    %695 = vrot.lane.b32.xlu0 %v651, 112
    %v696 = vpop.permute.xlu0 %695
    %697 = vrot.lane.b32.xlu0 %v652, 112
    %v698 = vpop.permute.xlu0 %697
    %699 = vrot.lane.b32.xlu0 %v653, 112
    %v700 = vpop.permute.xlu0 %699
    %701 = vrot.lane.b32.xlu0 %v654, 112
    %v702 = vpop.permute.xlu0 %701
    %v719 = vsel %vm135, %v672, 0.0
    %720 = vadd.xlane.f32.xlu0 %v719
    %v721 = vpop.xlane.xlu0 %720
    %v722 = vsel %vm135, %v674, 0.0
    %723 = vadd.xlane.f32.xlu0 %v722
    %v724 = vpop.xlane.xlu0 %723
    %v725 = vsel %vm135, %v676, 0.0
    %726 = vadd.xlane.f32.xlu0 %v725
    %v727 = vpop.xlane.xlu0 %726
    %v728 = vsel %vm135, %v678, 0.0
    %729 = vadd.xlane.f32.xlu0 %v728
    %v730 = vpop.xlane.xlu0 %729
    %v731 = vsel %vm135, %v680, 0.0
    %732 = vadd.xlane.f32.xlu0 %v731
    %v733 = vpop.xlane.xlu0 %732
    %v734 = vsel %vm135, %v682, 0.0
    %735 = vadd.xlane.f32.xlu0 %v734
    %v736 = vpop.xlane.xlu0 %735
    %v737 = vsel %vm135, %v684, 0.0
    %738 = vadd.xlane.f32.xlu0 %v737
    %v739 = vpop.xlane.xlu0 %738
    %v740 = vsel %vm135, %v686, 0.0
    %741 = vadd.xlane.f32.xlu0 %v740
    %v742 = vpop.xlane.xlu0 %741
    %v743 = vsel %vm135, %v688, 0.0
    %744 = vadd.xlane.f32.xlu0 %v743
    %v745 = vpop.xlane.xlu0 %744
    %v746 = vsel %vm135, %v690, 0.0
    %747 = vadd.xlane.f32.xlu0 %v746
    %v748 = vpop.xlane.xlu0 %747
    %v749 = vsel %vm135, %v692, 0.0
    %750 = vadd.xlane.f32.xlu0 %v749
    %v751 = vpop.xlane.xlu0 %750
    %v752 = vsel %vm135, %v694, 0.0
    %753 = vadd.xlane.f32.xlu0 %v752
    %v754 = vpop.xlane.xlu0 %753
    %v755 = vsel %vm135, %v696, 0.0
    %756 = vadd.xlane.f32.xlu0 %v755
    %v757 = vpop.xlane.xlu0 %756
    %v758 = vsel %vm135, %v698, 0.0
    %759 = vadd.xlane.f32.xlu0 %v758
    %v760 = vpop.xlane.xlu0 %759
    %v761 = vsel %vm135, %v700, 0.0
    %762 = vadd.xlane.f32.xlu0 %v761
    %v763 = vpop.xlane.xlu0 %762
    %v764 = vsel %vm135, %v702, 0.0
    %765 = vadd.xlane.f32.xlu0 %v764
    %v766 = vpop.xlane.xlu0 %765
    %v767 = vmul.f32 %v721, %v190
    %v768 = vmul.f32 %v724, %v190
    %v769 = vmul.f32 %v727, %v190
    %v770 = vmul.f32 %v730, %v190
    %v771 = vmul.f32 %v733, %v190
    %v772 = vmul.f32 %v736, %v190
    %v773 = vmul.f32 %v739, %v190
    %v774 = vmul.f32 %v742, %v190
    %v775 = vmul.f32 %v745, %v190
    %v776 = vmul.f32 %v748, %v190
    %v777 = vmul.f32 %v751, %v190
    %v778 = vmul.f32 %v754, %v190
    %v779 = vmul.f32 %v757, %v190
    %v780 = vmul.f32 %v760, %v190
    %v781 = vmul.f32 %v763, %v190
    %v782 = vmul.f32 %v766, %v190
    %v783 = vadd.f32 %v767, 1e-05
    %v784 = vadd.f32 %v768, 1e-05
    %v785 = vadd.f32 %v769, 1e-05
    %v786 = vadd.f32 %v770, 1e-05
    %v787 = vadd.f32 %v771, 1e-05
    %v788 = vadd.f32 %v772, 1e-05
    %v789 = vadd.f32 %v773, 1e-05
    %v790 = vadd.f32 %v774, 1e-05
    %v791 = vadd.f32 %v775, 1e-05
    %v792 = vadd.f32 %v776, 1e-05
    %v793 = vadd.f32 %v777, 1e-05
    %v794 = vadd.f32 %v778, 1e-05
    %v795 = vadd.f32 %v779, 1e-05
    %v796 = vadd.f32 %v780, 1e-05
    %v797 = vadd.f32 %v781, 1e-05
    %v798 = vadd.f32 %v782, 1e-05
    %v799 = vrsqrt.pop %v783
    %v800 = vmul.f32 %v799, %v783
    %v801 = vmul.f32 %v800, %v799
    %v802 = vmul.f32 0.5, %v801
    %v803 = vsub.f32 1.5, %v802
    %v804 = vmul.f32 %v799, %v803
    %vm805 = vweird.f32 %v783
    %vm806 = vweird.f32 %v799
    %vm807 = vmor %vm805, %vm806
    %v808 = vsel %vm807, %v799, %v804
    %v809 = vrsqrt.pop %v784
    %v810 = vmul.f32 %v809, %v784
    %v811 = vmul.f32 %v810, %v809
    %v812 = vmul.f32 0.5, %v811
    %v813 = vsub.f32 1.5, %v812
    %v814 = vmul.f32 %v809, %v813
    %vm815 = vweird.f32 %v784
    %vm816 = vweird.f32 %v809
    %vm817 = vmor %vm815, %vm816
    %v818 = vsel %vm817, %v809, %v814
    %v819 = vrsqrt.pop %v785
    %v820 = vmul.f32 %v819, %v785
    %v821 = vmul.f32 %v820, %v819
    %v822 = vmul.f32 0.5, %v821
    %v823 = vsub.f32 1.5, %v822
    %v824 = vmul.f32 %v819, %v823
    %vm825 = vweird.f32 %v785
    %vm826 = vweird.f32 %v819
    %vm827 = vmor %vm825, %vm826
    %v828 = vsel %vm827, %v819, %v824
    %v829 = vrsqrt.pop %v786
    %v830 = vmul.f32 %v829, %v786
    %v831 = vmul.f32 %v830, %v829
    %v832 = vmul.f32 0.5, %v831
    %v833 = vsub.f32 1.5, %v832
    %v834 = vmul.f32 %v829, %v833
    %vm835 = vweird.f32 %v786
    %vm836 = vweird.f32 %v829
    %vm837 = vmor %vm835, %vm836
    %v838 = vsel %vm837, %v829, %v834
    %v839 = vrsqrt.pop %v787
    %v840 = vmul.f32 %v839, %v787
    %v841 = vmul.f32 %v840, %v839
    %v842 = vmul.f32 0.5, %v841
    %v843 = vsub.f32 1.5, %v842
    %v844 = vmul.f32 %v839, %v843
    %vm845 = vweird.f32 %v787
    %vm846 = vweird.f32 %v839
    %vm847 = vmor %vm845, %vm846
    %v848 = vsel %vm847, %v839, %v844
    %v849 = vrsqrt.pop %v788
    %v850 = vmul.f32 %v849, %v788
    %v851 = vmul.f32 %v850, %v849
    %v852 = vmul.f32 0.5, %v851
    %v853 = vsub.f32 1.5, %v852
    %v854 = vmul.f32 %v849, %v853
    %vm855 = vweird.f32 %v788
    %vm856 = vweird.f32 %v849
    %vm857 = vmor %vm855, %vm856
    %v858 = vsel %vm857, %v849, %v854
    %v859 = vrsqrt.pop %v789
    %v860 = vmul.f32 %v859, %v789
    %v861 = vmul.f32 %v860, %v859
    %v862 = vmul.f32 0.5, %v861
    %v863 = vsub.f32 1.5, %v862
    %v864 = vmul.f32 %v859, %v863
    %vm865 = vweird.f32 %v789
    %vm866 = vweird.f32 %v859
    %vm867 = vmor %vm865, %vm866
    %v868 = vsel %vm867, %v859, %v864
    %v869 = vrsqrt.pop %v790
    %v870 = vmul.f32 %v869, %v790
    %v871 = vmul.f32 %v870, %v869
    %v872 = vmul.f32 0.5, %v871
    %v873 = vsub.f32 1.5, %v872
    %v874 = vmul.f32 %v869, %v873
    %vm875 = vweird.f32 %v790
    %vm876 = vweird.f32 %v869
    %vm877 = vmor %vm875, %vm876
    %v878 = vsel %vm877, %v869, %v874
    %v879 = vrsqrt.pop %v791
    %v880 = vmul.f32 %v879, %v791
    %v881 = vmul.f32 %v880, %v879
    %v882 = vmul.f32 0.5, %v881
    %v883 = vsub.f32 1.5, %v882
    %v884 = vmul.f32 %v879, %v883
    %vm885 = vweird.f32 %v791
    %vm886 = vweird.f32 %v879
    %vm887 = vmor %vm885, %vm886
    %v888 = vsel %vm887, %v879, %v884
    %v889 = vrsqrt.pop %v792
    %v890 = vmul.f32 %v889, %v792
    %v891 = vmul.f32 %v890, %v889
    %v892 = vmul.f32 0.5, %v891
    %v893 = vsub.f32 1.5, %v892
    %v894 = vmul.f32 %v889, %v893
    %vm895 = vweird.f32 %v792
    %vm896 = vweird.f32 %v889
    %vm897 = vmor %vm895, %vm896
    %v898 = vsel %vm897, %v889, %v894
    %v899 = vrsqrt.pop %v793
    %v900 = vmul.f32 %v899, %v793
    %v901 = vmul.f32 %v900, %v899
    %v902 = vmul.f32 0.5, %v901
    %v903 = vsub.f32 1.5, %v902
    %v904 = vmul.f32 %v899, %v903
    %vm905 = vweird.f32 %v793
    %vm906 = vweird.f32 %v899
    %vm907 = vmor %vm905, %vm906
    %v908 = vsel %vm907, %v899, %v904
    %v909 = vrsqrt.pop %v794
    %v910 = vmul.f32 %v909, %v794
    %v911 = vmul.f32 %v910, %v909
    %v912 = vmul.f32 0.5, %v911
    %v913 = vsub.f32 1.5, %v912
    %v914 = vmul.f32 %v909, %v913
    %vm915 = vweird.f32 %v794
    %vm916 = vweird.f32 %v909
    %vm917 = vmor %vm915, %vm916
    %v918 = vsel %vm917, %v909, %v914
    %v919 = vrsqrt.pop %v795
    %v920 = vmul.f32 %v919, %v795
    %v921 = vmul.f32 %v920, %v919
    %v922 = vmul.f32 0.5, %v921
    %v923 = vsub.f32 1.5, %v922
    %v924 = vmul.f32 %v919, %v923
    %vm925 = vweird.f32 %v795
    %vm926 = vweird.f32 %v919
    %vm927 = vmor %vm925, %vm926
    %v928 = vsel %vm927, %v919, %v924
    %v929 = vrsqrt.pop %v796
    %v930 = vmul.f32 %v929, %v796
    %v931 = vmul.f32 %v930, %v929
    %v932 = vmul.f32 0.5, %v931
    %v933 = vsub.f32 1.5, %v932
    %v934 = vmul.f32 %v929, %v933
    %vm935 = vweird.f32 %v796
    %vm936 = vweird.f32 %v929
    %vm937 = vmor %vm935, %vm936
    %v938 = vsel %vm937, %v929, %v934
    %v939 = vrsqrt.pop %v797
    %v940 = vmul.f32 %v939, %v797
    %v941 = vmul.f32 %v940, %v939
    %v942 = vmul.f32 0.5, %v941
    %v943 = vsub.f32 1.5, %v942
    %v944 = vmul.f32 %v939, %v943
    %vm945 = vweird.f32 %v797
    %vm946 = vweird.f32 %v939
    %vm947 = vmor %vm945, %vm946
    %v948 = vsel %vm947, %v939, %v944
    %v949 = vrsqrt.pop %v798
    %v950 = vmul.f32 %v949, %v798
    %v951 = vmul.f32 %v950, %v949
    %v952 = vmul.f32 0.5, %v951
    %v953 = vsub.f32 1.5, %v952
    %v954 = vmul.f32 %v949, %v953
    %vm955 = vweird.f32 %v798
    %vm956 = vweird.f32 %v949
    %vm957 = vmor %vm955, %vm956
    %v958 = vsel %vm957, %v949, %v954
    %v959 = vmul.f32 %v623, %v808
    %v960 = vmul.f32 %v624, %v818
    %v961 = vmul.f32 %v625, %v828
    %v962 = vmul.f32 %v626, %v838
    %v963 = vmul.f32 %v627, %v848
    %v964 = vmul.f32 %v628, %v858
    %v965 = vmul.f32 %v629, %v868
    %v966 = vmul.f32 %v630, %v878
    %v967 = vmul.f32 %v631, %v888
    %v968 = vmul.f32 %v632, %v898
    %v969 = vmul.f32 %v633, %v908
    %v970 = vmul.f32 %v634, %v918
    %v971 = vmul.f32 %v635, %v928
    %v972 = vmul.f32 %v636, %v938
    %v973 = vmul.f32 %v637, %v948
    %v974 = vmul.f32 %v638, %v958
    %v975 = vsel %vm135, %v479, %v959
    %v976 = vsel %vm135, %v480, %v960
    %v977 = vsel %vm135, %v481, %v961
    %v978 = vsel %vm135, %v482, %v962
    %v979 = vsel %vm135, %v483, %v963
    %v980 = vsel %vm135, %v484, %v964
    %v981 = vsel %vm135, %v485, %v965
    %v982 = vsel %vm135, %v486, %v966
    %v983 = vsel %vm135, %v487, %v967
    %v984 = vsel %vm135, %v488, %v968
    %v985 = vsel %vm135, %v489, %v969
    %v986 = vsel %vm135, %v490, %v970
    %v987 = vsel %vm135, %v491, %v971
    %v988 = vsel %vm135, %v492, %v972
    %v989 = vsel %vm135, %v493, %v973
    %v990 = vsel %vm135, %v494, %v974
    %v992 = vperm.slane %v133, 0
    %v994 = vmul.f32 %v975, %v992
    %v995 = vmul.f32 %v976, %v992
    %v996 = vmul.f32 %v977, %v992
    %v997 = vmul.f32 %v978, %v992
    %v998 = vmul.f32 %v979, %v992
    %v999 = vmul.f32 %v980, %v992
    %v1000 = vmul.f32 %v981, %v992
    %v1001 = vmul.f32 %v982, %v992
    %v1002 = vmul.f32 %v983, %v992
    %v1003 = vmul.f32 %v984, %v992
    %v1004 = vmul.f32 %v985, %v992
    %v1005 = vmul.f32 %v986, %v992
    %v1006 = vmul.f32 %v987, %v992
    %v1007 = vmul.f32 %v988, %v992
    %v1008 = vmul.f32 %v989, %v992
    %v1009 = vmul.f32 %v990, %v992
    %v1011 = vperm.slane %v134, 0
    %v1013 = vadd.f32 %v994, %v1011
    %v1014 = vadd.f32 %v995, %v1011
    %v1015 = vadd.f32 %v996, %v1011
    %v1016 = vadd.f32 %v997, %v1011
    %v1017 = vadd.f32 %v998, %v1011
    %v1018 = vadd.f32 %v999, %v1011
    %v1019 = vadd.f32 %v1000, %v1011
    %v1020 = vadd.f32 %v1001, %v1011
    %v1021 = vadd.f32 %v1002, %v1011
    %v1022 = vadd.f32 %v1003, %v1011
    %v1023 = vadd.f32 %v1004, %v1011
    %v1024 = vadd.f32 %v1005, %v1011
    %v1025 = vadd.f32 %v1006, %v1011
    %v1026 = vadd.f32 %v1007, %v1011
    %v1027 = vadd.f32 %v1008, %v1011
    %v1028 = vadd.f32 %v1009, %v1011
    %1029 = vst.msk [vmem:[#allocation2] sm:$0xff] %vm59, %v1013
    %1030 = vst.msk [vmem:[#allocation2 + $0x10] sm:$0xff] %vm59, %v1014
    %1031 = vst.msk [vmem:[#allocation2 + $0x20] sm:$0xff] %vm59, %v1015
    %1032 = vst.msk [vmem:[#allocation2 + $0x30] sm:$0xff] %vm59, %v1016
    %1033 = vst.msk [vmem:[#allocation2 + $0x40] sm:$0xff] %vm59, %v1017
    %1034 = vst.msk [vmem:[#allocation2 + $0x50] sm:$0xff] %vm59, %v1018
    %1035 = vst.msk [vmem:[#allocation2 + $0x60] sm:$0xff] %vm59, %v1019
    %1036 = vst.msk [vmem:[#allocation2 + $0x70] sm:$0xff] %vm59, %v1020
    %1037 = vst.msk [vmem:[#allocation2 + $0x80] sm:$0xff] %vm59, %v1021
    %1038 = vst.msk [vmem:[#allocation2 + $0x90] sm:$0xff] %vm59, %v1022
    %1039 = vst.msk [vmem:[#allocation2 + $0xa0] sm:$0xff] %vm59, %v1023
    %1040 = vst.msk [vmem:[#allocation2 + $0xb0] sm:$0xff] %vm59, %v1024
    %1041 = vst.msk [vmem:[#allocation2 + $0xc0] sm:$0xff] %vm59, %v1025
    %1042 = vst.msk [vmem:[#allocation2 + $0xd0] sm:$0xff] %vm59, %v1026
    %1043 = vst.msk [vmem:[#allocation2 + $0xe0] sm:$0xff] %vm59, %v1027
    %1044 = vst.msk [vmem:[#allocation2 + $0xf0] sm:$0xff] %vm59, %v1028
    %1045 = vrot.lane.b32.xlu0 %v94, 96
    %v1046 = vpop.permute.xlu0 %1045
    %1047 = vrot.lane.b32.xlu0 %v96, 96
    %v1048 = vpop.permute.xlu0 %1047
    %1049 = vrot.lane.b32.xlu0 %v99, 96
    %v1050 = vpop.permute.xlu0 %1049
    %1051 = vrot.lane.b32.xlu0 %v101, 96
    %v1052 = vpop.permute.xlu0 %1051
    %1053 = vrot.lane.b32.xlu0 %v104, 96
    %v1054 = vpop.permute.xlu0 %1053
    %1055 = vrot.lane.b32.xlu0 %v106, 96
    %v1056 = vpop.permute.xlu0 %1055
    %1057 = vrot.lane.b32.xlu0 %v109, 96
    %v1058 = vpop.permute.xlu0 %1057
    %1059 = vrot.lane.b32.xlu0 %v111, 96
    %v1060 = vpop.permute.xlu0 %1059
    %1061 = vrot.lane.b32.xlu0 %v114, 96
    %v1062 = vpop.permute.xlu0 %1061
    %1063 = vrot.lane.b32.xlu0 %v116, 96
    %v1064 = vpop.permute.xlu0 %1063
    %1065 = vrot.lane.b32.xlu0 %v119, 96
    %v1066 = vpop.permute.xlu0 %1065
    %1067 = vrot.lane.b32.xlu0 %v121, 96
    %v1068 = vpop.permute.xlu0 %1067
    %1069 = vrot.lane.b32.xlu0 %v124, 96
    %v1070 = vpop.permute.xlu0 %1069
    %1071 = vrot.lane.b32.xlu0 %v126, 96
    %v1072 = vpop.permute.xlu0 %1071
    %1073 = vrot.lane.b32.xlu0 %v129, 96
    %v1074 = vpop.permute.xlu0 %1073
    %1075 = vrot.lane.b32.xlu0 %v131, 96
    %v1076 = vpop.permute.xlu0 %1075
    %v1093 = vsel %vm135, %v1046, 0.0
    %1094 = vadd.xlane.f32.xlu0 %v1093
    %v1095 = vpop.xlane.xlu0 %1094
    %v1096 = vsel %vm135, %v1048, 0.0
    %1097 = vadd.xlane.f32.xlu0 %v1096
    %v1098 = vpop.xlane.xlu0 %1097
    %v1099 = vsel %vm135, %v1050, 0.0
    %1100 = vadd.xlane.f32.xlu0 %v1099
    %v1101 = vpop.xlane.xlu0 %1100
    %v1102 = vsel %vm135, %v1052, 0.0
    %1103 = vadd.xlane.f32.xlu0 %v1102
    %v1104 = vpop.xlane.xlu0 %1103
    %v1105 = vsel %vm135, %v1054, 0.0
    %1106 = vadd.xlane.f32.xlu0 %v1105
    %v1107 = vpop.xlane.xlu0 %1106
    %v1108 = vsel %vm135, %v1056, 0.0
    %1109 = vadd.xlane.f32.xlu0 %v1108
    %v1110 = vpop.xlane.xlu0 %1109
    %v1111 = vsel %vm135, %v1058, 0.0
    %1112 = vadd.xlane.f32.xlu0 %v1111
    %v1113 = vpop.xlane.xlu0 %1112
    %v1114 = vsel %vm135, %v1060, 0.0
    %1115 = vadd.xlane.f32.xlu0 %v1114
    %v1116 = vpop.xlane.xlu0 %1115
    %v1117 = vsel %vm135, %v1062, 0.0
    %1118 = vadd.xlane.f32.xlu0 %v1117
    %v1119 = vpop.xlane.xlu0 %1118
    %v1120 = vsel %vm135, %v1064, 0.0
    %1121 = vadd.xlane.f32.xlu0 %v1120
    %v1122 = vpop.xlane.xlu0 %1121
    %v1123 = vsel %vm135, %v1066, 0.0
    %1124 = vadd.xlane.f32.xlu0 %v1123
    %v1125 = vpop.xlane.xlu0 %1124
    %v1126 = vsel %vm135, %v1068, 0.0
    %1127 = vadd.xlane.f32.xlu0 %v1126
    %v1128 = vpop.xlane.xlu0 %1127
    %v1129 = vsel %vm135, %v1070, 0.0
    %1130 = vadd.xlane.f32.xlu0 %v1129
    %v1131 = vpop.xlane.xlu0 %1130
    %v1132 = vsel %vm135, %v1072, 0.0
    %1133 = vadd.xlane.f32.xlu0 %v1132
    %v1134 = vpop.xlane.xlu0 %1133
    %v1135 = vsel %vm135, %v1074, 0.0
    %1136 = vadd.xlane.f32.xlu0 %v1135
    %v1137 = vpop.xlane.xlu0 %1136
    %v1138 = vsel %vm135, %v1076, 0.0
    %1139 = vadd.xlane.f32.xlu0 %v1138
    %v1140 = vpop.xlane.xlu0 %1139
    %v1141 = vmul.f32 %v1095, %v190
    %v1142 = vmul.f32 %v1098, %v190
    %v1143 = vmul.f32 %v1101, %v190
    %v1144 = vmul.f32 %v1104, %v190
    %v1145 = vmul.f32 %v1107, %v190
    %v1146 = vmul.f32 %v1110, %v190
    %v1147 = vmul.f32 %v1113, %v190
    %v1148 = vmul.f32 %v1116, %v190
    %v1149 = vmul.f32 %v1119, %v190
    %v1150 = vmul.f32 %v1122, %v190
    %v1151 = vmul.f32 %v1125, %v190
    %v1152 = vmul.f32 %v1128, %v190
    %v1153 = vmul.f32 %v1131, %v190
    %v1154 = vmul.f32 %v1134, %v190
    %v1155 = vmul.f32 %v1137, %v190
    %v1156 = vmul.f32 %v1140, %v190
    %v1157 = vsub.f32 %v94, %v1141
    %v1158 = vsub.f32 %v96, %v1142
    %v1159 = vsub.f32 %v99, %v1143
    %v1160 = vsub.f32 %v101, %v1144
    %v1161 = vsub.f32 %v104, %v1145
    %v1162 = vsub.f32 %v106, %v1146
    %v1163 = vsub.f32 %v109, %v1147
    %v1164 = vsub.f32 %v111, %v1148
    %v1165 = vsub.f32 %v114, %v1149
    %v1166 = vsub.f32 %v116, %v1150
    %v1167 = vsub.f32 %v119, %v1151
    %v1168 = vsub.f32 %v121, %v1152
    %v1169 = vsub.f32 %v124, %v1153
    %v1170 = vsub.f32 %v126, %v1154
    %v1171 = vsub.f32 %v129, %v1155
    %v1172 = vsub.f32 %v131, %v1156
    %v1173 = vmul.f32 %v1157, %v1157
    %v1174 = vmul.f32 %v1158, %v1158
    %v1175 = vmul.f32 %v1159, %v1159
    %v1176 = vmul.f32 %v1160, %v1160
    %v1177 = vmul.f32 %v1161, %v1161
    %v1178 = vmul.f32 %v1162, %v1162
    %v1179 = vmul.f32 %v1163, %v1163
    %v1180 = vmul.f32 %v1164, %v1164
    %v1181 = vmul.f32 %v1165, %v1165
    %v1182 = vmul.f32 %v1166, %v1166
    %v1183 = vmul.f32 %v1167, %v1167
    %v1184 = vmul.f32 %v1168, %v1168
    %v1185 = vmul.f32 %v1169, %v1169
    %v1186 = vmul.f32 %v1170, %v1170
    %v1187 = vmul.f32 %v1171, %v1171
    %v1188 = vmul.f32 %v1172, %v1172
    %1205 = vrot.lane.b32.xlu0 %v1173, 96
    %v1206 = vpop.permute.xlu0 %1205
    %1207 = vrot.lane.b32.xlu0 %v1174, 96
    %v1208 = vpop.permute.xlu0 %1207
    %1209 = vrot.lane.b32.xlu0 %v1175, 96
    %v1210 = vpop.permute.xlu0 %1209
    %1211 = vrot.lane.b32.xlu0 %v1176, 96
    %v1212 = vpop.permute.xlu0 %1211
    %1213 = vrot.lane.b32.xlu0 %v1177, 96
    %v1214 = vpop.permute.xlu0 %1213
    %1215 = vrot.lane.b32.xlu0 %v1178, 96
    %v1216 = vpop.permute.xlu0 %1215
    %1217 = vrot.lane.b32.xlu0 %v1179, 96
    %v1218 = vpop.permute.xlu0 %1217
    %1219 = vrot.lane.b32.xlu0 %v1180, 96
    %v1220 = vpop.permute.xlu0 %1219
    %1221 = vrot.lane.b32.xlu0 %v1181, 96
    %v1222 = vpop.permute.xlu0 %1221
    %1223 = vrot.lane.b32.xlu0 %v1182, 96
    %v1224 = vpop.permute.xlu0 %1223
    %1225 = vrot.lane.b32.xlu0 %v1183, 96
    %v1226 = vpop.permute.xlu0 %1225
    %1227 = vrot.lane.b32.xlu0 %v1184, 96
    %v1228 = vpop.permute.xlu0 %1227
    %1229 = vrot.lane.b32.xlu0 %v1185, 96
    %v1230 = vpop.permute.xlu0 %1229
    %1231 = vrot.lane.b32.xlu0 %v1186, 96
    %v1232 = vpop.permute.xlu0 %1231
    %1233 = vrot.lane.b32.xlu0 %v1187, 96
    %v1234 = vpop.permute.xlu0 %1233
    %1235 = vrot.lane.b32.xlu0 %v1188, 96
    %v1236 = vpop.permute.xlu0 %1235
    %v1253 = vsel %vm135, %v1206, 0.0
    %1254 = vadd.xlane.f32.xlu0 %v1253
    %v1255 = vpop.xlane.xlu0 %1254
    %v1256 = vsel %vm135, %v1208, 0.0
    %1257 = vadd.xlane.f32.xlu0 %v1256
    %v1258 = vpop.xlane.xlu0 %1257
    %v1259 = vsel %vm135, %v1210, 0.0
    %1260 = vadd.xlane.f32.xlu0 %v1259
    %v1261 = vpop.xlane.xlu0 %1260
    %v1262 = vsel %vm135, %v1212, 0.0
    %1263 = vadd.xlane.f32.xlu0 %v1262
    %v1264 = vpop.xlane.xlu0 %1263
    %v1265 = vsel %vm135, %v1214, 0.0
    %1266 = vadd.xlane.f32.xlu0 %v1265
    %v1267 = vpop.xlane.xlu0 %1266
    %v1268 = vsel %vm135, %v1216, 0.0
    %1269 = vadd.xlane.f32.xlu0 %v1268
    %v1270 = vpop.xlane.xlu0 %1269
    %v1271 = vsel %vm135, %v1218, 0.0
    %1272 = vadd.xlane.f32.xlu0 %v1271
    %v1273 = vpop.xlane.xlu0 %1272
    %v1274 = vsel %vm135, %v1220, 0.0
    %1275 = vadd.xlane.f32.xlu0 %v1274
    %v1276 = vpop.xlane.xlu0 %1275
    %v1277 = vsel %vm135, %v1222, 0.0
    %1278 = vadd.xlane.f32.xlu0 %v1277
    %v1279 = vpop.xlane.xlu0 %1278
    %v1280 = vsel %vm135, %v1224, 0.0
    %1281 = vadd.xlane.f32.xlu0 %v1280
    %v1282 = vpop.xlane.xlu0 %1281
    %v1283 = vsel %vm135, %v1226, 0.0
    %1284 = vadd.xlane.f32.xlu0 %v1283
    %v1285 = vpop.xlane.xlu0 %1284
    %v1286 = vsel %vm135, %v1228, 0.0
    %1287 = vadd.xlane.f32.xlu0 %v1286
    %v1288 = vpop.xlane.xlu0 %1287
    %v1289 = vsel %vm135, %v1230, 0.0
    %1290 = vadd.xlane.f32.xlu0 %v1289
    %v1291 = vpop.xlane.xlu0 %1290
    %v1292 = vsel %vm135, %v1232, 0.0
    %1293 = vadd.xlane.f32.xlu0 %v1292
    %v1294 = vpop.xlane.xlu0 %1293
    %v1295 = vsel %vm135, %v1234, 0.0
    %1296 = vadd.xlane.f32.xlu0 %v1295
    %v1297 = vpop.xlane.xlu0 %1296
    %v1298 = vsel %vm135, %v1236, 0.0
    %1299 = vadd.xlane.f32.xlu0 %v1298
    %v1300 = vpop.xlane.xlu0 %1299
    %v1301 = vmul.f32 %v1255, %v190
    %v1302 = vmul.f32 %v1258, %v190
    %v1303 = vmul.f32 %v1261, %v190
    %v1304 = vmul.f32 %v1264, %v190
    %v1305 = vmul.f32 %v1267, %v190
    %v1306 = vmul.f32 %v1270, %v190
    %v1307 = vmul.f32 %v1273, %v190
    %v1308 = vmul.f32 %v1276, %v190
    %v1309 = vmul.f32 %v1279, %v190
    %v1310 = vmul.f32 %v1282, %v190
    %v1311 = vmul.f32 %v1285, %v190
    %v1312 = vmul.f32 %v1288, %v190
    %v1313 = vmul.f32 %v1291, %v190
    %v1314 = vmul.f32 %v1294, %v190
    %v1315 = vmul.f32 %v1297, %v190
    %v1316 = vmul.f32 %v1300, %v190
    %v1317 = vadd.f32 %v1301, 1e-05
    %v1318 = vadd.f32 %v1302, 1e-05
    %v1319 = vadd.f32 %v1303, 1e-05
    %v1320 = vadd.f32 %v1304, 1e-05
    %v1321 = vadd.f32 %v1305, 1e-05
    %v1322 = vadd.f32 %v1306, 1e-05
    %v1323 = vadd.f32 %v1307, 1e-05
    %v1324 = vadd.f32 %v1308, 1e-05
    %v1325 = vadd.f32 %v1309, 1e-05
    %v1326 = vadd.f32 %v1310, 1e-05
    %v1327 = vadd.f32 %v1311, 1e-05
    %v1328 = vadd.f32 %v1312, 1e-05
    %v1329 = vadd.f32 %v1313, 1e-05
    %v1330 = vadd.f32 %v1314, 1e-05
    %v1331 = vadd.f32 %v1315, 1e-05
    %v1332 = vadd.f32 %v1316, 1e-05
    %v1333 = vrsqrt.pop %v1317
    %v1334 = vmul.f32 %v1333, %v1317
    %v1335 = vmul.f32 %v1334, %v1333
    %v1336 = vmul.f32 0.5, %v1335
    %v1337 = vsub.f32 1.5, %v1336
    %v1338 = vmul.f32 %v1333, %v1337
    %vm1339 = vweird.f32 %v1317
    %vm1340 = vweird.f32 %v1333
    %vm1341 = vmor %vm1339, %vm1340
    %v1342 = vsel %vm1341, %v1333, %v1338
    %v1343 = vrsqrt.pop %v1318
    %v1344 = vmul.f32 %v1343, %v1318
    %v1345 = vmul.f32 %v1344, %v1343
    %v1346 = vmul.f32 0.5, %v1345
    %v1347 = vsub.f32 1.5, %v1346
    %v1348 = vmul.f32 %v1343, %v1347
    %vm1349 = vweird.f32 %v1318
    %vm1350 = vweird.f32 %v1343
    %vm1351 = vmor %vm1349, %vm1350
    %v1352 = vsel %vm1351, %v1343, %v1348
    %v1353 = vrsqrt.pop %v1319
    %v1354 = vmul.f32 %v1353, %v1319
    %v1355 = vmul.f32 %v1354, %v1353
    %v1356 = vmul.f32 0.5, %v1355
    %v1357 = vsub.f32 1.5, %v1356
    %v1358 = vmul.f32 %v1353, %v1357
    %vm1359 = vweird.f32 %v1319
    %vm1360 = vweird.f32 %v1353
    %vm1361 = vmor %vm1359, %vm1360
    %v1362 = vsel %vm1361, %v1353, %v1358
    %v1363 = vrsqrt.pop %v1320
    %v1364 = vmul.f32 %v1363, %v1320
    %v1365 = vmul.f32 %v1364, %v1363
    %v1366 = vmul.f32 0.5, %v1365
    %v1367 = vsub.f32 1.5, %v1366
    %v1368 = vmul.f32 %v1363, %v1367
    %vm1369 = vweird.f32 %v1320
    %vm1370 = vweird.f32 %v1363
    %vm1371 = vmor %vm1369, %vm1370
    %v1372 = vsel %vm1371, %v1363, %v1368
    %v1373 = vrsqrt.pop %v1321
    %v1374 = vmul.f32 %v1373, %v1321
    %v1375 = vmul.f32 %v1374, %v1373
    %v1376 = vmul.f32 0.5, %v1375
    %v1377 = vsub.f32 1.5, %v1376
    %v1378 = vmul.f32 %v1373, %v1377
    %vm1379 = vweird.f32 %v1321
    %vm1380 = vweird.f32 %v1373
    %vm1381 = vmor %vm1379, %vm1380
    %v1382 = vsel %vm1381, %v1373, %v1378
    %v1383 = vrsqrt.pop %v1322
    %v1384 = vmul.f32 %v1383, %v1322
    %v1385 = vmul.f32 %v1384, %v1383
    %v1386 = vmul.f32 0.5, %v1385
    %v1387 = vsub.f32 1.5, %v1386
    %v1388 = vmul.f32 %v1383, %v1387
    %vm1389 = vweird.f32 %v1322
    %vm1390 = vweird.f32 %v1383
    %vm1391 = vmor %vm1389, %vm1390
    %v1392 = vsel %vm1391, %v1383, %v1388
    %v1393 = vrsqrt.pop %v1323
    %v1394 = vmul.f32 %v1393, %v1323
    %v1395 = vmul.f32 %v1394, %v1393
    %v1396 = vmul.f32 0.5, %v1395
    %v1397 = vsub.f32 1.5, %v1396
    %v1398 = vmul.f32 %v1393, %v1397
    %vm1399 = vweird.f32 %v1323
    %vm1400 = vweird.f32 %v1393
    %vm1401 = vmor %vm1399, %vm1400
    %v1402 = vsel %vm1401, %v1393, %v1398
    %v1403 = vrsqrt.pop %v1324
    %v1404 = vmul.f32 %v1403, %v1324
    %v1405 = vmul.f32 %v1404, %v1403
    %v1406 = vmul.f32 0.5, %v1405
    %v1407 = vsub.f32 1.5, %v1406
    %v1408 = vmul.f32 %v1403, %v1407
    %vm1409 = vweird.f32 %v1324
    %vm1410 = vweird.f32 %v1403
    %vm1411 = vmor %vm1409, %vm1410
    %v1412 = vsel %vm1411, %v1403, %v1408
    %v1413 = vrsqrt.pop %v1325
    %v1414 = vmul.f32 %v1413, %v1325
    %v1415 = vmul.f32 %v1414, %v1413
    %v1416 = vmul.f32 0.5, %v1415
    %v1417 = vsub.f32 1.5, %v1416
    %v1418 = vmul.f32 %v1413, %v1417
    %vm1419 = vweird.f32 %v1325
    %vm1420 = vweird.f32 %v1413
    %vm1421 = vmor %vm1419, %vm1420
    %v1422 = vsel %vm1421, %v1413, %v1418
    %v1423 = vrsqrt.pop %v1326
    %v1424 = vmul.f32 %v1423, %v1326
    %v1425 = vmul.f32 %v1424, %v1423
    %v1426 = vmul.f32 0.5, %v1425
    %v1427 = vsub.f32 1.5, %v1426
    %v1428 = vmul.f32 %v1423, %v1427
    %vm1429 = vweird.f32 %v1326
    %vm1430 = vweird.f32 %v1423
    %vm1431 = vmor %vm1429, %vm1430
    %v1432 = vsel %vm1431, %v1423, %v1428
    %v1433 = vrsqrt.pop %v1327
    %v1434 = vmul.f32 %v1433, %v1327
    %v1435 = vmul.f32 %v1434, %v1433
    %v1436 = vmul.f32 0.5, %v1435
    %v1437 = vsub.f32 1.5, %v1436
    %v1438 = vmul.f32 %v1433, %v1437
    %vm1439 = vweird.f32 %v1327
    %vm1440 = vweird.f32 %v1433
    %vm1441 = vmor %vm1439, %vm1440
    %v1442 = vsel %vm1441, %v1433, %v1438
    %v1443 = vrsqrt.pop %v1328
    %v1444 = vmul.f32 %v1443, %v1328
    %v1445 = vmul.f32 %v1444, %v1443
    %v1446 = vmul.f32 0.5, %v1445
    %v1447 = vsub.f32 1.5, %v1446
    %v1448 = vmul.f32 %v1443, %v1447
    %vm1449 = vweird.f32 %v1328
    %vm1450 = vweird.f32 %v1443
    %vm1451 = vmor %vm1449, %vm1450
    %v1452 = vsel %vm1451, %v1443, %v1448
    %v1453 = vrsqrt.pop %v1329
    %v1454 = vmul.f32 %v1453, %v1329
    %v1455 = vmul.f32 %v1454, %v1453
    %v1456 = vmul.f32 0.5, %v1455
    %v1457 = vsub.f32 1.5, %v1456
    %v1458 = vmul.f32 %v1453, %v1457
    %vm1459 = vweird.f32 %v1329
    %vm1460 = vweird.f32 %v1453
    %vm1461 = vmor %vm1459, %vm1460
    %v1462 = vsel %vm1461, %v1453, %v1458
    %v1463 = vrsqrt.pop %v1330
    %v1464 = vmul.f32 %v1463, %v1330
    %v1465 = vmul.f32 %v1464, %v1463
    %v1466 = vmul.f32 0.5, %v1465
    %v1467 = vsub.f32 1.5, %v1466
    %v1468 = vmul.f32 %v1463, %v1467
    %vm1469 = vweird.f32 %v1330
    %vm1470 = vweird.f32 %v1463
    %vm1471 = vmor %vm1469, %vm1470
    %v1472 = vsel %vm1471, %v1463, %v1468
    %v1473 = vrsqrt.pop %v1331
    %v1474 = vmul.f32 %v1473, %v1331
    %v1475 = vmul.f32 %v1474, %v1473
    %v1476 = vmul.f32 0.5, %v1475
    %v1477 = vsub.f32 1.5, %v1476
    %v1478 = vmul.f32 %v1473, %v1477
    %vm1479 = vweird.f32 %v1331
    %vm1480 = vweird.f32 %v1473
    %vm1481 = vmor %vm1479, %vm1480
    %v1482 = vsel %vm1481, %v1473, %v1478
    %v1483 = vrsqrt.pop %v1332
    %v1484 = vmul.f32 %v1483, %v1332
    %v1485 = vmul.f32 %v1484, %v1483
    %v1486 = vmul.f32 0.5, %v1485
    %v1487 = vsub.f32 1.5, %v1486
    %v1488 = vmul.f32 %v1483, %v1487
    %vm1489 = vweird.f32 %v1332
    %vm1490 = vweird.f32 %v1483
    %vm1491 = vmor %vm1489, %vm1490
    %v1492 = vsel %vm1491, %v1483, %v1488
    %v1493 = vmul.f32 %v1157, %v1342
    %v1494 = vmul.f32 %v1158, %v1352
    %v1495 = vmul.f32 %v1159, %v1362
    %v1496 = vmul.f32 %v1160, %v1372
    %v1497 = vmul.f32 %v1161, %v1382
    %v1498 = vmul.f32 %v1162, %v1392
    %v1499 = vmul.f32 %v1163, %v1402
    %v1500 = vmul.f32 %v1164, %v1412
    %v1501 = vmul.f32 %v1165, %v1422
    %v1502 = vmul.f32 %v1166, %v1432
    %v1503 = vmul.f32 %v1167, %v1442
    %v1504 = vmul.f32 %v1168, %v1452
    %v1505 = vmul.f32 %v1169, %v1462
    %v1506 = vmul.f32 %v1170, %v1472
    %v1507 = vmul.f32 %v1171, %v1482
    %v1508 = vmul.f32 %v1172, %v1492
    %1509 = vrot.lane.b32.xlu0 %v94, 80
    %v1510 = vpop.permute.xlu0 %1509
    %1511 = vrot.lane.b32.xlu0 %v96, 80
    %v1512 = vpop.permute.xlu0 %1511
    %1513 = vrot.lane.b32.xlu0 %v99, 80
    %v1514 = vpop.permute.xlu0 %1513
    %1515 = vrot.lane.b32.xlu0 %v101, 80
    %v1516 = vpop.permute.xlu0 %1515
    %1517 = vrot.lane.b32.xlu0 %v104, 80
    %v1518 = vpop.permute.xlu0 %1517
    %1519 = vrot.lane.b32.xlu0 %v106, 80
    %v1520 = vpop.permute.xlu0 %1519
    %1521 = vrot.lane.b32.xlu0 %v109, 80
    %v1522 = vpop.permute.xlu0 %1521
    %1523 = vrot.lane.b32.xlu0 %v111, 80
    %v1524 = vpop.permute.xlu0 %1523
    %1525 = vrot.lane.b32.xlu0 %v114, 80
    %v1526 = vpop.permute.xlu0 %1525
    %1527 = vrot.lane.b32.xlu0 %v116, 80
    %v1528 = vpop.permute.xlu0 %1527
    %1529 = vrot.lane.b32.xlu0 %v119, 80
    %v1530 = vpop.permute.xlu0 %1529
    %1531 = vrot.lane.b32.xlu0 %v121, 80
    %v1532 = vpop.permute.xlu0 %1531
    %1533 = vrot.lane.b32.xlu0 %v124, 80
    %v1534 = vpop.permute.xlu0 %1533
    %1535 = vrot.lane.b32.xlu0 %v126, 80
    %v1536 = vpop.permute.xlu0 %1535
    %1537 = vrot.lane.b32.xlu0 %v129, 80
    %v1538 = vpop.permute.xlu0 %1537
    %1539 = vrot.lane.b32.xlu0 %v131, 80
    %v1540 = vpop.permute.xlu0 %1539
    %v1557 = vsel %vm135, %v1510, 0.0
    %1558 = vadd.xlane.f32.xlu0 %v1557
    %v1559 = vpop.xlane.xlu0 %1558
    %v1560 = vsel %vm135, %v1512, 0.0
    %1561 = vadd.xlane.f32.xlu0 %v1560
    %v1562 = vpop.xlane.xlu0 %1561
    %v1563 = vsel %vm135, %v1514, 0.0
    %1564 = vadd.xlane.f32.xlu0 %v1563
    %v1565 = vpop.xlane.xlu0 %1564
    %v1566 = vsel %vm135, %v1516, 0.0
    %1567 = vadd.xlane.f32.xlu0 %v1566
    %v1568 = vpop.xlane.xlu0 %1567
    %v1569 = vsel %vm135, %v1518, 0.0
    %1570 = vadd.xlane.f32.xlu0 %v1569
    %v1571 = vpop.xlane.xlu0 %1570
    %v1572 = vsel %vm135, %v1520, 0.0
    %1573 = vadd.xlane.f32.xlu0 %v1572
    %v1574 = vpop.xlane.xlu0 %1573
    %v1575 = vsel %vm135, %v1522, 0.0
    %1576 = vadd.xlane.f32.xlu0 %v1575
    %v1577 = vpop.xlane.xlu0 %1576
    %v1578 = vsel %vm135, %v1524, 0.0
    %1579 = vadd.xlane.f32.xlu0 %v1578
    %v1580 = vpop.xlane.xlu0 %1579
    %v1581 = vsel %vm135, %v1526, 0.0
    %1582 = vadd.xlane.f32.xlu0 %v1581
    %v1583 = vpop.xlane.xlu0 %1582
    %v1584 = vsel %vm135, %v1528, 0.0
    %1585 = vadd.xlane.f32.xlu0 %v1584
    %v1586 = vpop.xlane.xlu0 %1585
    %v1587 = vsel %vm135, %v1530, 0.0
    %1588 = vadd.xlane.f32.xlu0 %v1587
    %v1589 = vpop.xlane.xlu0 %1588
    %v1590 = vsel %vm135, %v1532, 0.0
    %1591 = vadd.xlane.f32.xlu0 %v1590
    %v1592 = vpop.xlane.xlu0 %1591
    %v1593 = vsel %vm135, %v1534, 0.0
    %1594 = vadd.xlane.f32.xlu0 %v1593
    %v1595 = vpop.xlane.xlu0 %1594
    %v1596 = vsel %vm135, %v1536, 0.0
    %1597 = vadd.xlane.f32.xlu0 %v1596
    %v1598 = vpop.xlane.xlu0 %1597
    %v1599 = vsel %vm135, %v1538, 0.0
    %1600 = vadd.xlane.f32.xlu0 %v1599
    %v1601 = vpop.xlane.xlu0 %1600
    %v1602 = vsel %vm135, %v1540, 0.0
    %1603 = vadd.xlane.f32.xlu0 %v1602
    %v1604 = vpop.xlane.xlu0 %1603
    %v1605 = vmul.f32 %v1559, %v190
    %v1606 = vmul.f32 %v1562, %v190
    %v1607 = vmul.f32 %v1565, %v190
    %v1608 = vmul.f32 %v1568, %v190
    %v1609 = vmul.f32 %v1571, %v190
    %v1610 = vmul.f32 %v1574, %v190
    %v1611 = vmul.f32 %v1577, %v190
    %v1612 = vmul.f32 %v1580, %v190
    %v1613 = vmul.f32 %v1583, %v190
    %v1614 = vmul.f32 %v1586, %v190
    %v1615 = vmul.f32 %v1589, %v190
    %v1616 = vmul.f32 %v1592, %v190
    %v1617 = vmul.f32 %v1595, %v190
    %v1618 = vmul.f32 %v1598, %v190
    %v1619 = vmul.f32 %v1601, %v190
    %v1620 = vmul.f32 %v1604, %v190
    %v1621 = vsub.f32 %v94, %v1605
    %v1622 = vsub.f32 %v96, %v1606
    %v1623 = vsub.f32 %v99, %v1607
    %v1624 = vsub.f32 %v101, %v1608
    %v1625 = vsub.f32 %v104, %v1609
    %v1626 = vsub.f32 %v106, %v1610
    %v1627 = vsub.f32 %v109, %v1611
    %v1628 = vsub.f32 %v111, %v1612
    %v1629 = vsub.f32 %v114, %v1613
    %v1630 = vsub.f32 %v116, %v1614
    %v1631 = vsub.f32 %v119, %v1615
    %v1632 = vsub.f32 %v121, %v1616
    %v1633 = vsub.f32 %v124, %v1617
    %v1634 = vsub.f32 %v126, %v1618
    %v1635 = vsub.f32 %v129, %v1619
    %v1636 = vsub.f32 %v131, %v1620
    %v1637 = vmul.f32 %v1621, %v1621
    %v1638 = vmul.f32 %v1622, %v1622
    %v1639 = vmul.f32 %v1623, %v1623
    %v1640 = vmul.f32 %v1624, %v1624
    %v1641 = vmul.f32 %v1625, %v1625
    %v1642 = vmul.f32 %v1626, %v1626
    %v1643 = vmul.f32 %v1627, %v1627
    %v1644 = vmul.f32 %v1628, %v1628
    %v1645 = vmul.f32 %v1629, %v1629
    %v1646 = vmul.f32 %v1630, %v1630
    %v1647 = vmul.f32 %v1631, %v1631
    %v1648 = vmul.f32 %v1632, %v1632
    %v1649 = vmul.f32 %v1633, %v1633
    %v1650 = vmul.f32 %v1634, %v1634
    %v1651 = vmul.f32 %v1635, %v1635
    %v1652 = vmul.f32 %v1636, %v1636
    %1669 = vrot.lane.b32.xlu0 %v1637, 80
    %v1670 = vpop.permute.xlu0 %1669
    %1671 = vrot.lane.b32.xlu0 %v1638, 80
    %v1672 = vpop.permute.xlu0 %1671
    %1673 = vrot.lane.b32.xlu0 %v1639, 80
    %v1674 = vpop.permute.xlu0 %1673
    %1675 = vrot.lane.b32.xlu0 %v1640, 80
    %v1676 = vpop.permute.xlu0 %1675
    %1677 = vrot.lane.b32.xlu0 %v1641, 80
    %v1678 = vpop.permute.xlu0 %1677
    %1679 = vrot.lane.b32.xlu0 %v1642, 80
    %v1680 = vpop.permute.xlu0 %1679
    %1681 = vrot.lane.b32.xlu0 %v1643, 80
    %v1682 = vpop.permute.xlu0 %1681
    %1683 = vrot.lane.b32.xlu0 %v1644, 80
    %v1684 = vpop.permute.xlu0 %1683
    %1685 = vrot.lane.b32.xlu0 %v1645, 80
    %v1686 = vpop.permute.xlu0 %1685
    %1687 = vrot.lane.b32.xlu0 %v1646, 80
    %v1688 = vpop.permute.xlu0 %1687
    %1689 = vrot.lane.b32.xlu0 %v1647, 80
    %v1690 = vpop.permute.xlu0 %1689
    %1691 = vrot.lane.b32.xlu0 %v1648, 80
    %v1692 = vpop.permute.xlu0 %1691
    %1693 = vrot.lane.b32.xlu0 %v1649, 80
    %v1694 = vpop.permute.xlu0 %1693
    %1695 = vrot.lane.b32.xlu0 %v1650, 80
    %v1696 = vpop.permute.xlu0 %1695
    %1697 = vrot.lane.b32.xlu0 %v1651, 80
    %v1698 = vpop.permute.xlu0 %1697
    %1699 = vrot.lane.b32.xlu0 %v1652, 80
    %v1700 = vpop.permute.xlu0 %1699
    %v1717 = vsel %vm135, %v1670, 0.0
    %1718 = vadd.xlane.f32.xlu0 %v1717
    %v1719 = vpop.xlane.xlu0 %1718
    %v1720 = vsel %vm135, %v1672, 0.0
    %1721 = vadd.xlane.f32.xlu0 %v1720
    %v1722 = vpop.xlane.xlu0 %1721
    %v1723 = vsel %vm135, %v1674, 0.0
    %1724 = vadd.xlane.f32.xlu0 %v1723
    %v1725 = vpop.xlane.xlu0 %1724
    %v1726 = vsel %vm135, %v1676, 0.0
    %1727 = vadd.xlane.f32.xlu0 %v1726
    %v1728 = vpop.xlane.xlu0 %1727
    %v1729 = vsel %vm135, %v1678, 0.0
    %1730 = vadd.xlane.f32.xlu0 %v1729
    %v1731 = vpop.xlane.xlu0 %1730
    %v1732 = vsel %vm135, %v1680, 0.0
    %1733 = vadd.xlane.f32.xlu0 %v1732
    %v1734 = vpop.xlane.xlu0 %1733
    %v1735 = vsel %vm135, %v1682, 0.0
    %1736 = vadd.xlane.f32.xlu0 %v1735
    %v1737 = vpop.xlane.xlu0 %1736
    %v1738 = vsel %vm135, %v1684, 0.0
    %1739 = vadd.xlane.f32.xlu0 %v1738
    %v1740 = vpop.xlane.xlu0 %1739
    %v1741 = vsel %vm135, %v1686, 0.0
    %1742 = vadd.xlane.f32.xlu0 %v1741
    %v1743 = vpop.xlane.xlu0 %1742
    %v1744 = vsel %vm135, %v1688, 0.0
    %1745 = vadd.xlane.f32.xlu0 %v1744
    %v1746 = vpop.xlane.xlu0 %1745
    %v1747 = vsel %vm135, %v1690, 0.0
    %1748 = vadd.xlane.f32.xlu0 %v1747
    %v1749 = vpop.xlane.xlu0 %1748
    %v1750 = vsel %vm135, %v1692, 0.0
    %1751 = vadd.xlane.f32.xlu0 %v1750
    %v1752 = vpop.xlane.xlu0 %1751
    %v1753 = vsel %vm135, %v1694, 0.0
    %1754 = vadd.xlane.f32.xlu0 %v1753
    %v1755 = vpop.xlane.xlu0 %1754
    %v1756 = vsel %vm135, %v1696, 0.0
    %1757 = vadd.xlane.f32.xlu0 %v1756
    %v1758 = vpop.xlane.xlu0 %1757
    %v1759 = vsel %vm135, %v1698, 0.0
    %1760 = vadd.xlane.f32.xlu0 %v1759
    %v1761 = vpop.xlane.xlu0 %1760
    %v1762 = vsel %vm135, %v1700, 0.0
    %1763 = vadd.xlane.f32.xlu0 %v1762
    %v1764 = vpop.xlane.xlu0 %1763
    %v1765 = vmul.f32 %v1719, %v190
    %v1766 = vmul.f32 %v1722, %v190
    %v1767 = vmul.f32 %v1725, %v190
    %v1768 = vmul.f32 %v1728, %v190
    %v1769 = vmul.f32 %v1731, %v190
    %v1770 = vmul.f32 %v1734, %v190
    %v1771 = vmul.f32 %v1737, %v190
    %v1772 = vmul.f32 %v1740, %v190
    %v1773 = vmul.f32 %v1743, %v190
    %v1774 = vmul.f32 %v1746, %v190
    %v1775 = vmul.f32 %v1749, %v190
    %v1776 = vmul.f32 %v1752, %v190
    %v1777 = vmul.f32 %v1755, %v190
    %v1778 = vmul.f32 %v1758, %v190
    %v1779 = vmul.f32 %v1761, %v190
    %v1780 = vmul.f32 %v1764, %v190
    %v1781 = vadd.f32 %v1765, 1e-05
    %v1782 = vadd.f32 %v1766, 1e-05
    %v1783 = vadd.f32 %v1767, 1e-05
    %v1784 = vadd.f32 %v1768, 1e-05
    %v1785 = vadd.f32 %v1769, 1e-05
    %v1786 = vadd.f32 %v1770, 1e-05
    %v1787 = vadd.f32 %v1771, 1e-05
    %v1788 = vadd.f32 %v1772, 1e-05
    %v1789 = vadd.f32 %v1773, 1e-05
    %v1790 = vadd.f32 %v1774, 1e-05
    %v1791 = vadd.f32 %v1775, 1e-05
    %v1792 = vadd.f32 %v1776, 1e-05
    %v1793 = vadd.f32 %v1777, 1e-05
    %v1794 = vadd.f32 %v1778, 1e-05
    %v1795 = vadd.f32 %v1779, 1e-05
    %v1796 = vadd.f32 %v1780, 1e-05
    %v1797 = vrsqrt.pop %v1781
    %v1798 = vmul.f32 %v1797, %v1781
    %v1799 = vmul.f32 %v1798, %v1797
    %v1800 = vmul.f32 0.5, %v1799
    %v1801 = vsub.f32 1.5, %v1800
    %v1802 = vmul.f32 %v1797, %v1801
    %vm1803 = vweird.f32 %v1781
    %vm1804 = vweird.f32 %v1797
    %vm1805 = vmor %vm1803, %vm1804
    %v1806 = vsel %vm1805, %v1797, %v1802
    %v1807 = vrsqrt.pop %v1782
    %v1808 = vmul.f32 %v1807, %v1782
    %v1809 = vmul.f32 %v1808, %v1807
    %v1810 = vmul.f32 0.5, %v1809
    %v1811 = vsub.f32 1.5, %v1810
    %v1812 = vmul.f32 %v1807, %v1811
    %vm1813 = vweird.f32 %v1782
    %vm1814 = vweird.f32 %v1807
    %vm1815 = vmor %vm1813, %vm1814
    %v1816 = vsel %vm1815, %v1807, %v1812
    %v1817 = vrsqrt.pop %v1783
    %v1818 = vmul.f32 %v1817, %v1783
    %v1819 = vmul.f32 %v1818, %v1817
    %v1820 = vmul.f32 0.5, %v1819
    %v1821 = vsub.f32 1.5, %v1820
    %v1822 = vmul.f32 %v1817, %v1821
    %vm1823 = vweird.f32 %v1783
    %vm1824 = vweird.f32 %v1817
    %vm1825 = vmor %vm1823, %vm1824
    %v1826 = vsel %vm1825, %v1817, %v1822
    %v1827 = vrsqrt.pop %v1784
    %v1828 = vmul.f32 %v1827, %v1784
    %v1829 = vmul.f32 %v1828, %v1827
    %v1830 = vmul.f32 0.5, %v1829
    %v1831 = vsub.f32 1.5, %v1830
    %v1832 = vmul.f32 %v1827, %v1831
    %vm1833 = vweird.f32 %v1784
    %vm1834 = vweird.f32 %v1827
    %vm1835 = vmor %vm1833, %vm1834
    %v1836 = vsel %vm1835, %v1827, %v1832
    %v1837 = vrsqrt.pop %v1785
    %v1838 = vmul.f32 %v1837, %v1785
    %v1839 = vmul.f32 %v1838, %v1837
    %v1840 = vmul.f32 0.5, %v1839
    %v1841 = vsub.f32 1.5, %v1840
    %v1842 = vmul.f32 %v1837, %v1841
    %vm1843 = vweird.f32 %v1785
    %vm1844 = vweird.f32 %v1837
    %vm1845 = vmor %vm1843, %vm1844
    %v1846 = vsel %vm1845, %v1837, %v1842
    %v1847 = vrsqrt.pop %v1786
    %v1848 = vmul.f32 %v1847, %v1786
    %v1849 = vmul.f32 %v1848, %v1847
    %v1850 = vmul.f32 0.5, %v1849
    %v1851 = vsub.f32 1.5, %v1850
    %v1852 = vmul.f32 %v1847, %v1851
    %vm1853 = vweird.f32 %v1786
    %vm1854 = vweird.f32 %v1847
    %vm1855 = vmor %vm1853, %vm1854
    %v1856 = vsel %vm1855, %v1847, %v1852
    %v1857 = vrsqrt.pop %v1787
    %v1858 = vmul.f32 %v1857, %v1787
    %v1859 = vmul.f32 %v1858, %v1857
    %v1860 = vmul.f32 0.5, %v1859
    %v1861 = vsub.f32 1.5, %v1860
    %v1862 = vmul.f32 %v1857, %v1861
    %vm1863 = vweird.f32 %v1787
    %vm1864 = vweird.f32 %v1857
    %vm1865 = vmor %vm1863, %vm1864
    %v1866 = vsel %vm1865, %v1857, %v1862
    %v1867 = vrsqrt.pop %v1788
    %v1868 = vmul.f32 %v1867, %v1788
    %v1869 = vmul.f32 %v1868, %v1867
    %v1870 = vmul.f32 0.5, %v1869
    %v1871 = vsub.f32 1.5, %v1870
    %v1872 = vmul.f32 %v1867, %v1871
    %vm1873 = vweird.f32 %v1788
    %vm1874 = vweird.f32 %v1867
    %vm1875 = vmor %vm1873, %vm1874
    %v1876 = vsel %vm1875, %v1867, %v1872
    %v1877 = vrsqrt.pop %v1789
    %v1878 = vmul.f32 %v1877, %v1789
    %v1879 = vmul.f32 %v1878, %v1877
    %v1880 = vmul.f32 0.5, %v1879
    %v1881 = vsub.f32 1.5, %v1880
    %v1882 = vmul.f32 %v1877, %v1881
    %vm1883 = vweird.f32 %v1789
    %vm1884 = vweird.f32 %v1877
    %vm1885 = vmor %vm1883, %vm1884
    %v1886 = vsel %vm1885, %v1877, %v1882
    %v1887 = vrsqrt.pop %v1790
    %v1888 = vmul.f32 %v1887, %v1790
    %v1889 = vmul.f32 %v1888, %v1887
    %v1890 = vmul.f32 0.5, %v1889
    %v1891 = vsub.f32 1.5, %v1890
    %v1892 = vmul.f32 %v1887, %v1891
    %vm1893 = vweird.f32 %v1790
    %vm1894 = vweird.f32 %v1887
    %vm1895 = vmor %vm1893, %vm1894
    %v1896 = vsel %vm1895, %v1887, %v1892
    %v1897 = vrsqrt.pop %v1791
    %v1898 = vmul.f32 %v1897, %v1791
    %v1899 = vmul.f32 %v1898, %v1897
    %v1900 = vmul.f32 0.5, %v1899
    %v1901 = vsub.f32 1.5, %v1900
    %v1902 = vmul.f32 %v1897, %v1901
    %vm1903 = vweird.f32 %v1791
    %vm1904 = vweird.f32 %v1897
    %vm1905 = vmor %vm1903, %vm1904
    %v1906 = vsel %vm1905, %v1897, %v1902
    %v1907 = vrsqrt.pop %v1792
    %v1908 = vmul.f32 %v1907, %v1792
    %v1909 = vmul.f32 %v1908, %v1907
    %v1910 = vmul.f32 0.5, %v1909
    %v1911 = vsub.f32 1.5, %v1910
    %v1912 = vmul.f32 %v1907, %v1911
    %vm1913 = vweird.f32 %v1792
    %vm1914 = vweird.f32 %v1907
    %vm1915 = vmor %vm1913, %vm1914
    %v1916 = vsel %vm1915, %v1907, %v1912
    %v1917 = vrsqrt.pop %v1793
    %v1918 = vmul.f32 %v1917, %v1793
    %v1919 = vmul.f32 %v1918, %v1917
    %v1920 = vmul.f32 0.5, %v1919
    %v1921 = vsub.f32 1.5, %v1920
    %v1922 = vmul.f32 %v1917, %v1921
    %vm1923 = vweird.f32 %v1793
    %vm1924 = vweird.f32 %v1917
    %vm1925 = vmor %vm1923, %vm1924
    %v1926 = vsel %vm1925, %v1917, %v1922
    %v1927 = vrsqrt.pop %v1794
    %v1928 = vmul.f32 %v1927, %v1794
    %v1929 = vmul.f32 %v1928, %v1927
    %v1930 = vmul.f32 0.5, %v1929
    %v1931 = vsub.f32 1.5, %v1930
    %v1932 = vmul.f32 %v1927, %v1931
    %vm1933 = vweird.f32 %v1794
    %vm1934 = vweird.f32 %v1927
    %vm1935 = vmor %vm1933, %vm1934
    %v1936 = vsel %vm1935, %v1927, %v1932
    %v1937 = vrsqrt.pop %v1795
    %v1938 = vmul.f32 %v1937, %v1795
    %v1939 = vmul.f32 %v1938, %v1937
    %v1940 = vmul.f32 0.5, %v1939
    %v1941 = vsub.f32 1.5, %v1940
    %v1942 = vmul.f32 %v1937, %v1941
    %vm1943 = vweird.f32 %v1795
    %vm1944 = vweird.f32 %v1937
    %vm1945 = vmor %vm1943, %vm1944
    %v1946 = vsel %vm1945, %v1937, %v1942
    %v1947 = vrsqrt.pop %v1796
    %v1948 = vmul.f32 %v1947, %v1796
    %v1949 = vmul.f32 %v1948, %v1947
    %v1950 = vmul.f32 0.5, %v1949
    %v1951 = vsub.f32 1.5, %v1950
    %v1952 = vmul.f32 %v1947, %v1951
    %vm1953 = vweird.f32 %v1796
    %vm1954 = vweird.f32 %v1947
    %vm1955 = vmor %vm1953, %vm1954
    %v1956 = vsel %vm1955, %v1947, %v1952
    %v1957 = vmul.f32 %v1621, %v1806
    %v1958 = vmul.f32 %v1622, %v1816
    %v1959 = vmul.f32 %v1623, %v1826
    %v1960 = vmul.f32 %v1624, %v1836
    %v1961 = vmul.f32 %v1625, %v1846
    %v1962 = vmul.f32 %v1626, %v1856
    %v1963 = vmul.f32 %v1627, %v1866
    %v1964 = vmul.f32 %v1628, %v1876
    %v1965 = vmul.f32 %v1629, %v1886
    %v1966 = vmul.f32 %v1630, %v1896
    %v1967 = vmul.f32 %v1631, %v1906
    %v1968 = vmul.f32 %v1632, %v1916
    %v1969 = vmul.f32 %v1633, %v1926
    %v1970 = vmul.f32 %v1634, %v1936
    %v1971 = vmul.f32 %v1635, %v1946
    %v1972 = vmul.f32 %v1636, %v1956
    %1989 = vrot.lane.b32.xlu0 %v1493, 96
    %v1990 = vpop.permute.xlu0 %1989
    %1991 = vrot.lane.b32.xlu0 %v1494, 96
    %v1992 = vpop.permute.xlu0 %1991
    %1993 = vrot.lane.b32.xlu0 %v1495, 96
    %v1994 = vpop.permute.xlu0 %1993
    %1995 = vrot.lane.b32.xlu0 %v1496, 96
    %v1996 = vpop.permute.xlu0 %1995
    %1997 = vrot.lane.b32.xlu0 %v1497, 96
    %v1998 = vpop.permute.xlu0 %1997
    %1999 = vrot.lane.b32.xlu0 %v1498, 96
    %v2000 = vpop.permute.xlu0 %1999
    %2001 = vrot.lane.b32.xlu0 %v1499, 96
    %v2002 = vpop.permute.xlu0 %2001
    %2003 = vrot.lane.b32.xlu0 %v1500, 96
    %v2004 = vpop.permute.xlu0 %2003
    %2005 = vrot.lane.b32.xlu0 %v1501, 96
    %v2006 = vpop.permute.xlu0 %2005
    %2007 = vrot.lane.b32.xlu0 %v1502, 96
    %v2008 = vpop.permute.xlu0 %2007
    %2009 = vrot.lane.b32.xlu0 %v1503, 96
    %v2010 = vpop.permute.xlu0 %2009
    %2011 = vrot.lane.b32.xlu0 %v1504, 96
    %v2012 = vpop.permute.xlu0 %2011
    %2013 = vrot.lane.b32.xlu0 %v1505, 96
    %v2014 = vpop.permute.xlu0 %2013
    %2015 = vrot.lane.b32.xlu0 %v1506, 96
    %v2016 = vpop.permute.xlu0 %2015
    %2017 = vrot.lane.b32.xlu0 %v1507, 96
    %v2018 = vpop.permute.xlu0 %2017
    %2019 = vrot.lane.b32.xlu0 %v1508, 96
    %v2020 = vpop.permute.xlu0 %2019
    %2053 = vrot.lane.b32.xlu0 %v1957, 96
    %v2054 = vpop.permute.xlu0 %2053
    %2055 = vrot.lane.b32.xlu0 %v1958, 96
    %v2056 = vpop.permute.xlu0 %2055
    %2057 = vrot.lane.b32.xlu0 %v1959, 96
    %v2058 = vpop.permute.xlu0 %2057
    %2059 = vrot.lane.b32.xlu0 %v1960, 96
    %v2060 = vpop.permute.xlu0 %2059
    %2061 = vrot.lane.b32.xlu0 %v1961, 96
    %v2062 = vpop.permute.xlu0 %2061
    %2063 = vrot.lane.b32.xlu0 %v1962, 96
    %v2064 = vpop.permute.xlu0 %2063
    %2065 = vrot.lane.b32.xlu0 %v1963, 96
    %v2066 = vpop.permute.xlu0 %2065
    %2067 = vrot.lane.b32.xlu0 %v1964, 96
    %v2068 = vpop.permute.xlu0 %2067
    %2069 = vrot.lane.b32.xlu0 %v1965, 96
    %v2070 = vpop.permute.xlu0 %2069
    %2071 = vrot.lane.b32.xlu0 %v1966, 96
    %v2072 = vpop.permute.xlu0 %2071
    %2073 = vrot.lane.b32.xlu0 %v1967, 96
    %v2074 = vpop.permute.xlu0 %2073
    %2075 = vrot.lane.b32.xlu0 %v1968, 96
    %v2076 = vpop.permute.xlu0 %2075
    %2077 = vrot.lane.b32.xlu0 %v1969, 96
    %v2078 = vpop.permute.xlu0 %2077
    %2079 = vrot.lane.b32.xlu0 %v1970, 96
    %v2080 = vpop.permute.xlu0 %2079
    %2081 = vrot.lane.b32.xlu0 %v1971, 96
    %v2082 = vpop.permute.xlu0 %2081
    %2083 = vrot.lane.b32.xlu0 %v1972, 96
    %v2084 = vpop.permute.xlu0 %2083
    %v2101 = vsel %vm135, %v1990, %v2054
    %v2102 = vsel %vm135, %v1992, %v2056
    %v2103 = vsel %vm135, %v1994, %v2058
    %v2104 = vsel %vm135, %v1996, %v2060
    %v2105 = vsel %vm135, %v1998, %v2062
    %v2106 = vsel %vm135, %v2000, %v2064
    %v2107 = vsel %vm135, %v2002, %v2066
    %v2108 = vsel %vm135, %v2004, %v2068
    %v2109 = vsel %vm135, %v2006, %v2070
    %v2110 = vsel %vm135, %v2008, %v2072
    %v2111 = vsel %vm135, %v2010, %v2074
    %v2112 = vsel %vm135, %v2012, %v2076
    %v2113 = vsel %vm135, %v2014, %v2078
    %v2114 = vsel %vm135, %v2016, %v2080
    %v2115 = vsel %vm135, %v2018, %v2082
    %v2116 = vsel %vm135, %v2020, %v2084
    %v2117 = vmul.f32 %v2101, %v992
    %v2118 = vmul.f32 %v2102, %v992
    %v2119 = vmul.f32 %v2103, %v992
    %v2120 = vmul.f32 %v2104, %v992
    %v2121 = vmul.f32 %v2105, %v992
    %v2122 = vmul.f32 %v2106, %v992
    %v2123 = vmul.f32 %v2107, %v992
    %v2124 = vmul.f32 %v2108, %v992
    %v2125 = vmul.f32 %v2109, %v992
    %v2126 = vmul.f32 %v2110, %v992
    %v2127 = vmul.f32 %v2111, %v992
    %v2128 = vmul.f32 %v2112, %v992
    %v2129 = vmul.f32 %v2113, %v992
    %v2130 = vmul.f32 %v2114, %v992
    %v2131 = vmul.f32 %v2115, %v992
    %v2132 = vmul.f32 %v2116, %v992
    %v2133 = vadd.f32 %v2117, %v1011
    %v2134 = vadd.f32 %v2118, %v1011
    %v2135 = vadd.f32 %v2119, %v1011
    %v2136 = vadd.f32 %v2120, %v1011
    %v2137 = vadd.f32 %v2121, %v1011
    %v2138 = vadd.f32 %v2122, %v1011
    %v2139 = vadd.f32 %v2123, %v1011
    %v2140 = vadd.f32 %v2124, %v1011
    %v2141 = vadd.f32 %v2125, %v1011
    %v2142 = vadd.f32 %v2126, %v1011
    %v2143 = vadd.f32 %v2127, %v1011
    %v2144 = vadd.f32 %v2128, %v1011
    %v2145 = vadd.f32 %v2129, %v1011
    %v2146 = vadd.f32 %v2130, %v1011
    %v2147 = vadd.f32 %v2131, %v1011
    %v2148 = vadd.f32 %v2132, %v1011
    %s2149 = scalar_lea.vmem [#allocation2], 8
    %2150 = vst.msk [vmem:[%s2149] sm:$0xff] %vm59, %v2133
    %2151 = vst.msk [vmem:[%s2149 + $0x10] sm:$0xff] %vm59, %v2134
    %2152 = vst.msk [vmem:[%s2149 + $0x20] sm:$0xff] %vm59, %v2135
    %2153 = vst.msk [vmem:[%s2149 + $0x30] sm:$0xff] %vm59, %v2136
    %2154 = vst.msk [vmem:[%s2149 + $0x40] sm:$0xff] %vm59, %v2137
    %2155 = vst.msk [vmem:[%s2149 + $0x50] sm:$0xff] %vm59, %v2138
    %2156 = vst.msk [vmem:[%s2149 + $0x60] sm:$0xff] %vm59, %v2139
    %2157 = vst.msk [vmem:[%s2149 + $0x70] sm:$0xff] %vm59, %v2140
    %2158 = vst.msk [vmem:[%s2149 + $0x80] sm:$0xff] %vm59, %v2141
    %2159 = vst.msk [vmem:[%s2149 + $0x90] sm:$0xff] %vm59, %v2142
    %2160 = vst.msk [vmem:[%s2149 + $0xa0] sm:$0xff] %vm59, %v2143
    %2161 = vst.msk [vmem:[%s2149 + $0xb0] sm:$0xff] %vm59, %v2144
    %2162 = vst.msk [vmem:[%s2149 + $0xc0] sm:$0xff] %vm59, %v2145
    %2163 = vst.msk [vmem:[%s2149 + $0xd0] sm:$0xff] %vm59, %v2146
    %2164 = vst.msk [vmem:[%s2149 + $0xe0] sm:$0xff] %vm59, %v2147
    %2165 = vst.msk [vmem:[%s2149 + $0xf0] sm:$0xff] %vm59, %v2148
    // Predicated region
    $region18: #{tpu_custom_call.1} parent=1 // pred_check
      _
    $region19: #{tpu_custom_call.1} parent=1 // pred_check_branch
      %2167 = sbr.rel (0) target = $region21
    $region20: #{tpu_custom_call.1} parent=1 // pred_region
      %2169 = vsyncadd [#allocation3], 0
      %s2170 = sshll.u32 [#allocation2], 4
      %s2171 = int_to_ptr.vmem [resolvable:$true] %s2170
      %s2172 = sshll.u32 %s4, 4
      %s2173 = int_to_ptr.hbm [resolvable:$true] %s2172
      %2178 = dma.vmem_to_hbm [thread:$0]  %s2171, 4096, %s2173, [#allocation3], 128, 128, 8
    $region21: #{tpu_custom_call.1} parent=1 // pred_fallthru
      _
    // Predicated region
    $region22: #{tpu_custom_call.1} parent=1 // pred_check
      _
    $region23: #{tpu_custom_call.1} parent=1 // pred_check_branch
      %2180 = sbr.rel (0) target = $region25
    $region24: #{tpu_custom_call.1} parent=1 // pred_region
      %2182 = dma.done [#allocation3], 4096
    $region25: #{tpu_custom_call.1} parent=1 // pred_fallthru
      _
    %2183 = vsyncpa [#allocation3], 1

</llo_original>
